<compile_context>
chip_gen: v6e
topology: v6e:2x2x1
jax: 0.10.0
libtpu: 0.0.40
codegen_flags: <defaults>
</compile_context>

<pallas_src>
import jax
import jax.numpy as jnp
from jax.experimental import pallas as pl
from jax.experimental.pallas import tpu as pltpu
import numpy as np


# ----------------------------- Pallas kernel --------------------------------
def bilstm_kernel(x_ref, wih_ref, b_ref, whh_ref, h0_ref, c0_ref,
                  woutf_ref, woutb_ref, bout_ref,
                  out_ref):
    """Fused bidirectional LSTM + hidden2tag, all state in registers.

    x_ref    : (T, 2E)     row t = [emb(t) || emb(T-1-t)]
    wih_ref  : (2E, 8Hh)   block-structured, gate-interleaved input weights
    b_ref    : (1, 8Hh)    combined (b_ih + b_hh), both directions
    whh_ref  : (2Hh, 8Hh)  block-diagonal, gate-interleaved recurrent weights
    h0/c0    : (1, 2Hh)    fused [fwd || bwd] initial state
    woutf    : (2Hh, NPAD) hidden2tag fwd half (bwd rows zeroed), lane-padded
    woutb    : (2Hh, NPAD) hidden2tag bwd half (fwd rows zeroed), lane-padded
    bout_ref : (1, NPAD)
    out_ref  : (T, NPAD)   lane-dense output tile (sliced in the wrapper)
    Fused gate lane layout: [i_f,i_b | f_f,f_b | g_f,g_b | o_f,o_b].
    """
    T = x_ref.shape[0]
    G = whh_ref.shape[0]          # 2*Hh = fused hidden width

    # Input projections for every timestep and BOTH directions: one MXU matmul.
    xp = (jnp.dot(x_ref[...], wih_ref[...],
                  preferred_element_type=jnp.float32) + b_ref[...])   # (T, 8Hh)

    # Hoist the loop-invariant recurrent weights out of the serial recurrence.
    W_hh = whh_ref[...]

    h = h0_ref[...]               # (1, 2Hh) fused [fwd || bwd]
    c = c0_ref[...]
    hs = []                       # fused hidden row per step, kept in vregs
    # Fully unrolled (T is static & small): the scheduler overlaps adjacent
    # steps' MXU/EUP/VPU work and nothing touches VMEM inside the recurrence.
    for t in range(T):
        gates = xp[t:t + 1, :] + jnp.dot(
            h, W_hh, preferred_element_type=jnp.float32)   # (1, 8Hh): ONE vmatmul/step
        i = jax.nn.sigmoid(gates[:, 0 * G:1 * G])
        f = jax.nn.sigmoid(gates[:, 1 * G:2 * G])
        g = jnp.tanh(gates[:, 2 * G:3 * G])
        o = jax.nn.sigmoid(gates[:, 3 * G:4 * G])
        c = f * c + i * g
        h = o * jnp.tanh(c)
        hs.append(h)

    # Row t of hs_fwd holds [h_fwd(t) || h_bwd(T-1-t)]; row t of hs_rev holds
    # [h_fwd(T-1-t) || h_bwd(t)].  The per-direction output weights are padded
    # to the fused width with zeros on the "wrong" half, so no lane slicing or
    # row-reversal op is needed — the reversal is trace-time list ordering.
    hs_fwd = jnp.concatenate(hs, axis=0)           # (T, 2Hh)
    hs_rev = jnp.concatenate(hs[::-1], axis=0)     # (T, 2Hh)

    # hidden2tag: two lane-dense MXU matmuls straight into the 128-padded
    # output tile -> unmasked stores.
    out_ref[...] = (jnp.dot(hs_fwd, woutf_ref[...],
                            preferred_element_type=jnp.float32)
                    + jnp.dot(hs_rev, woutb_ref[...],
                              preferred_element_type=jnp.float32)
                    + bout_ref[...])


# --------------------------- weight packing glue -----------------------------
def _interleave_gate_cols(wf, wb):
    """(R,4Hh) x2 -> (2R, 8Hh) block-structured, columns [i_f,i_b,f_f,f_b,g_f,g_b,o_f,o_b]."""
    R, G4 = wf.shape
    Hh = G4 // 4
    W = jnp.zeros((2 * R, 4, 2 * Hh), wf.dtype)
    W = W.at[:R, :, :Hh].set(wf.reshape(R, 4, Hh))     # fwd rows -> fwd gate cols
    W = W.at[R:, :, Hh:].set(wb.reshape(R, 4, Hh))     # bwd rows -> bwd gate cols
    return W.reshape(2 * R, 8 * Hh)


def _interleave_gate_bias(bf, bb):
    Hh = bf.shape[1] // 4
    return jnp.concatenate(
        [bf.reshape(1, 4, Hh), bb.reshape(1, 4, Hh)], axis=2).reshape(1, 8 * Hh)


def bilstm_forward(sentence_ids, params):
    """Returns lstm_feats of shape (seq_len, tagset_size), matching BiLSTM.forward."""
    emb = params["embedding"][sentence_ids]            # (T, E) gather -> JAX glue
    T, E = emb.shape
    Hh = params["whh_f"].shape[0]                      # hidden_dim // 2
    ntags = params["wout"].shape[1]
    NPAD = ((ntags + 127) // 128) * 128                # lane-dense output width

    # ---- one-time weight packing (cacheable in a real model) ---------------
    wih_comb = _interleave_gate_cols(params["wih_f"], params["wih_b"])   # (2E, 8Hh)
    whh_comb = _interleave_gate_cols(params["whh_f"], params["whh_b"])   # (2Hh, 8Hh)
    b_comb = _interleave_gate_bias(params["b_f"], params["b_b"])         # (1, 8Hh)
    h0 = params["h0"].reshape(1, 2 * Hh)                                 # [fwd || bwd]
    c0 = params["c0"].reshape(1, 2 * Hh)
    # Per-direction hidden2tag weights padded to the fused hidden width (2Hh)
    # so the kernel never lane-slices the fused hidden rows.
    wout_f = jnp.zeros((2 * Hh, NPAD), jnp.float32).at[:Hh, :ntags].set(params["wout"][:Hh])
    wout_b = jnp.zeros((2 * Hh, NPAD), jnp.float32).at[Hh:, :ntags].set(params["wout"][Hh:])
    bout = jnp.zeros((1, NPAD), jnp.float32).at[:, :ntags].set(params["bout"])

    # Row t carries the fwd input at t and the bwd input at T-1-t, so the fused
    # recurrence reads exactly one row per step.
    x_comb = jnp.concatenate([emb, emb[::-1]], axis=1)                   # (T, 2E)

    vmem_specs = [pl.BlockSpec(memory_space=pltpu.MemorySpace.VMEM) for _ in range(9)]
    kernel = pl.pallas_call(
        bilstm_kernel,
        out_shape=jax.ShapeDtypeStruct((T, NPAD), jnp.float32),
        in_specs=vmem_specs,
        out_specs=pl.BlockSpec(memory_space=pltpu.MemorySpace.VMEM),
        # No scratch: all recurrence state stays in vregs at these sizes.
        compiler_params=pltpu.CompilerParams(vmem_limit_bytes=32 * 1024 * 1024),
    )
    out_pad = kernel(x_comb, wih_comb, b_comb, whh_comb, h0, c0,
                     wout_f, wout_b, bout)
    return out_pad[:, :ntags]                          # slice away lane padding


# ------------------------- pure-JAX reference --------------------------------
def _lstm_dir_ref(emb, wih, whh, b, h0, c0, reverse):
    T = emb.shape[0]
    Hh = whh.shape[0]
    xp = emb @ wih + b[0]
    h, c = h0, c0
    hs = []
    order = range(T - 1, -1, -1) if reverse else range(T)
    for t in order:
        gates = xp[t] + h @ whh
        i = jax.nn.sigmoid(gates[:Hh])
        f = jax.nn.sigmoid(gates[Hh:2 * Hh])
        g = jnp.tanh(gates[2 * Hh:3 * Hh])
        o = jax.nn.sigmoid(gates[3 * Hh:])
        c = f * c + i * g
        h = o * jnp.tanh(c)
        hs.append(h)
    if reverse:
        hs = hs[::-1]
    return jnp.stack(hs)


def bilstm_ref(sentence_ids, params):
    emb = params["embedding"][sentence_ids]
    hf = _lstm_dir_ref(emb, params["wih_f"], params["whh_f"], params["b_f"],
                       params["h0"][0], params["c0"][0], reverse=False)
    hb = _lstm_dir_ref(emb, params["wih_b"], params["whh_b"], params["b_b"],
                       params["h0"][1], params["c0"][1], reverse=True)
    hcat = jnp.concatenate([hf, hb], axis=1)
    return hcat @ params["wout"] + params["bout"][0]


# ----------------------------- parameter init --------------------------------
def init_params(key, vocab_size, embedding_dim, hidden_dim, tagset_size):
    Hh = hidden_dim // 2
    ks = jax.random.split(key, 12)
    s = 0.1
    p = {
        "embedding": jax.random.normal(ks[0], (vocab_size, embedding_dim), jnp.float32) * s,
        # weight_ih_l0 (4*Hh, E) stored transposed; gate order [i, f, g, o]
        "wih_f": jax.random.normal(ks[1], (embedding_dim, 4 * Hh), jnp.float32) * s,
        "whh_f": jax.random.normal(ks[2], (Hh, 4 * Hh), jnp.float32) * s,
        "b_f":   jax.random.normal(ks[3], (1, 4 * Hh), jnp.float32) * s,   # b_ih + b_hh combined
        "wih_b": jax.random.normal(ks[4], (embedding_dim, 4 * Hh), jnp.float32) * s,
        "whh_b": jax.random.normal(ks[5], (Hh, 4 * Hh), jnp.float32) * s,
        "b_b":   jax.random.normal(ks[6], (1, 4 * Hh), jnp.float32) * s,
        # init_hidden(): torch.randn(2, 1, Hh) -> deterministic normals here
        "h0":    jax.random.normal(ks[7], (2, Hh), jnp.float32),
        "c0":    jax.random.normal(ks[8], (2, Hh), jnp.float32),
        # hidden2tag: (tagset, hidden_dim) stored transposed
        "wout":  jax.random.normal(ks[9], (2 * Hh, tagset_size), jnp.float32) * s,
        "bout":  jax.random.normal(ks[10], (1, tagset_size), jnp.float32) * s,
    }
    return p, ks[11]


if __name__ == "__main__":
    vocab_size, embedding_dim, hidden_dim, tagset_size, seq_len = 20, 32, 32, 8, 8

    key = jax.random.PRNGKey(0)
    params, key = init_params(key, vocab_size, embedding_dim, hidden_dim, tagset_size)
    sentence = jax.random.randint(key, (seq_len,), 0, vocab_size, dtype=jnp.int32)

    feats = bilstm_forward(sentence, params)
    feats = jax.block_until_ready(feats)

    ref = bilstm_ref(sentence, params)
    np.testing.assert_allclose(np.asarray(feats), np.asarray(ref), rtol=1e-5, atol=1e-5)
    assert feats.shape == (seq_len, tagset_size)

    # TODO(synk): `predict` (softmax + greedy argmax over tags) is trivial host
    # glue and not part of the kernel hot path; omitted here.
    # TODO(synk): for production, batch sentences (B rows per recurrent matmul)
    # and tile over long T with a grid + carry instead of full unroll.
    print("KERNEL_OK")
</pallas_src>

<mosaic_0001>
module attributes {stable_mosaic.version = 11 : i64} {
  func.func @bilstm_kernel(%arg0: memref<8x64xf32, #tpu.memory_space<vmem>>, %arg1: memref<64x128xf32, #tpu.memory_space<vmem>>, %arg2: memref<1x128xf32, #tpu.memory_space<vmem>>, %arg3: memref<32x128xf32, #tpu.memory_space<vmem>>, %arg4: memref<1x32xf32, #tpu.memory_space<vmem>>, %arg5: memref<1x32xf32, #tpu.memory_space<vmem>>, %arg6: memref<32x128xf32, #tpu.memory_space<vmem>>, %arg7: memref<32x128xf32, #tpu.memory_space<vmem>>, %arg8: memref<1x128xf32, #tpu.memory_space<vmem>>, %arg9: memref<8x128xf32, #tpu.memory_space<vmem>>) attributes {dimension_semantics = [], scalar_prefetch = 0 : i64, scratch_operands = 0 : i64, tpu.core_type = #tpu.core_type<tc>} {
    %c0 = arith.constant 0 : index
    %c0_0 = arith.constant 0 : index
    %0 = vector.load %arg0[%c0, %c0_0] : memref<8x64xf32, #tpu.memory_space<vmem>>, vector<8x64xf32>
    %c0_1 = arith.constant 0 : index
    %c0_2 = arith.constant 0 : index
    %1 = vector.load %arg1[%c0_1, %c0_2] : memref<64x128xf32, #tpu.memory_space<vmem>>, vector<64x128xf32>
    %cst = arith.constant dense<0.000000e+00> : vector<8x128xf32>
    %2 = tpu.matmul %0, %1, %cst {dimension_numbers = #tpu.dot_dimension_numbers<[1], [0], [0], [1], [0, 0, 1, 1], [], []>} : vector<8x64xf32>, vector<64x128xf32>, vector<8x128xf32> -> vector<8x128xf32>
    %c0_3 = arith.constant 0 : index
    %c0_4 = arith.constant 0 : index
    %3 = vector.load %arg2[%c0_3, %c0_4] : memref<1x128xf32, #tpu.memory_space<vmem>>, vector<1x128xf32>
    %4 = vector.broadcast %3 : vector<1x128xf32> to vector<8x128xf32>
    %5 = arith.addf %2, %4 : vector<8x128xf32>
    %c0_5 = arith.constant 0 : index
    %c0_6 = arith.constant 0 : index
    %6 = vector.load %arg3[%c0_5, %c0_6] : memref<32x128xf32, #tpu.memory_space<vmem>>, vector<32x128xf32>
    %c0_7 = arith.constant 0 : index
    %c0_8 = arith.constant 0 : index
    %7 = vector.load %arg4[%c0_7, %c0_8] : memref<1x32xf32, #tpu.memory_space<vmem>>, vector<1x32xf32>
    %c0_9 = arith.constant 0 : index
    %c0_10 = arith.constant 0 : index
    %8 = vector.load %arg5[%c0_9, %c0_10] : memref<1x32xf32, #tpu.memory_space<vmem>>, vector<1x32xf32>
    %9 = vector.extract_strided_slice %5 {offsets = [0, 0], sizes = [1, 128], strides = [1, 1]} : vector<8x128xf32> to vector<1x128xf32>
    %cst_11 = arith.constant dense<0.000000e+00> : vector<1x128xf32>
    %10 = tpu.matmul %7, %6, %cst_11 {dimension_numbers = #tpu.dot_dimension_numbers<[1], [0], [0], [1], [0, 0, 1, 1], [], []>} : vector<1x32xf32>, vector<32x128xf32>, vector<1x128xf32> -> vector<1x128xf32>
    %11 = arith.addf %9, %10 : vector<1x128xf32>
    %12 = vector.extract_strided_slice %11 {offsets = [0, 0], sizes = [1, 32], strides = [1, 1]} : vector<1x128xf32> to vector<1x32xf32>
    %13 = arith.negf %12 : vector<1x32xf32>
    %14 = math.exp %13 : vector<1x32xf32>
    %cst_12 = arith.constant 1.000000e+00 : f32
    %15 = vector.broadcast %cst_12 : f32 to vector<1x32xf32>
    %16 = arith.addf %15, %14 : vector<1x32xf32>
    %17 = arith.divf %15, %16 : vector<1x32xf32>
    %18 = vector.extract_strided_slice %11 {offsets = [0, 32], sizes = [1, 32], strides = [1, 1]} : vector<1x128xf32> to vector<1x32xf32>
    %19 = arith.negf %18 : vector<1x32xf32>
    %20 = math.exp %19 : vector<1x32xf32>
    %cst_13 = arith.constant 1.000000e+00 : f32
    %21 = vector.broadcast %cst_13 : f32 to vector<1x32xf32>
    %22 = arith.addf %21, %20 : vector<1x32xf32>
    %23 = arith.divf %21, %22 : vector<1x32xf32>
    %24 = vector.extract_strided_slice %11 {offsets = [0, 64], sizes = [1, 32], strides = [1, 1]} : vector<1x128xf32> to vector<1x32xf32>
    %25 = math.tanh %24 : vector<1x32xf32>
    %26 = vector.extract_strided_slice %11 {offsets = [0, 96], sizes = [1, 32], strides = [1, 1]} : vector<1x128xf32> to vector<1x32xf32>
    %27 = arith.negf %26 : vector<1x32xf32>
    %28 = math.exp %27 : vector<1x32xf32>
    %cst_14 = arith.constant 1.000000e+00 : f32
    %29 = vector.broadcast %cst_14 : f32 to vector<1x32xf32>
    %30 = arith.addf %29, %28 : vector<1x32xf32>
    %31 = arith.divf %29, %30 : vector<1x32xf32>
    %32 = arith.mulf %23, %8 : vector<1x32xf32>
    %33 = arith.mulf %17, %25 : vector<1x32xf32>
    %34 = arith.addf %32, %33 : vector<1x32xf32>
    %35 = math.tanh %34 : vector<1x32xf32>
    %36 = arith.mulf %31, %35 : vector<1x32xf32>
    %37 = vector.extract_strided_slice %5 {offsets = [1, 0], sizes = [1, 128], strides = [1, 1]} : vector<8x128xf32> to vector<1x128xf32>
    %cst_15 = arith.constant dense<0.000000e+00> : vector<1x128xf32>
    %38 = tpu.matmul %36, %6, %cst_15 {dimension_numbers = #tpu.dot_dimension_numbers<[1], [0], [0], [1], [0, 0, 1, 1], [], []>} : vector<1x32xf32>, vector<32x128xf32>, vector<1x128xf32> -> vector<1x128xf32>
    %39 = arith.addf %37, %38 : vector<1x128xf32>
    %40 = vector.extract_strided_slice %39 {offsets = [0, 0], sizes = [1, 32], strides = [1, 1]} : vector<1x128xf32> to vector<1x32xf32>
    %41 = arith.negf %40 : vector<1x32xf32>
    %42 = math.exp %41 : vector<1x32xf32>
    %cst_16 = arith.constant 1.000000e+00 : f32
    %43 = vector.broadcast %cst_16 : f32 to vector<1x32xf32>
    %44 = arith.addf %43, %42 : vector<1x32xf32>
    %45 = arith.divf %43, %44 : vector<1x32xf32>
    %46 = vector.extract_strided_slice %39 {offsets = [0, 32], sizes = [1, 32], strides = [1, 1]} : vector<1x128xf32> to vector<1x32xf32>
    %47 = arith.negf %46 : vector<1x32xf32>
    %48 = math.exp %47 : vector<1x32xf32>
    %cst_17 = arith.constant 1.000000e+00 : f32
    %49 = vector.broadcast %cst_17 : f32 to vector<1x32xf32>
    %50 = arith.addf %49, %48 : vector<1x32xf32>
    %51 = arith.divf %49, %50 : vector<1x32xf32>
    %52 = vector.extract_strided_slice %39 {offsets = [0, 64], sizes = [1, 32], strides = [1, 1]} : vector<1x128xf32> to vector<1x32xf32>
    %53 = math.tanh %52 : vector<1x32xf32>
    %54 = vector.extract_strided_slice %39 {offsets = [0, 96], sizes = [1, 32], strides = [1, 1]} : vector<1x128xf32> to vector<1x32xf32>
    %55 = arith.negf %54 : vector<1x32xf32>
    %56 = math.exp %55 : vector<1x32xf32>
    %cst_18 = arith.constant 1.000000e+00 : f32
    %57 = vector.broadcast %cst_18 : f32 to vector<1x32xf32>
    %58 = arith.addf %57, %56 : vector<1x32xf32>
    %59 = arith.divf %57, %58 : vector<1x32xf32>
    %60 = arith.mulf %51, %34 : vector<1x32xf32>
    %61 = arith.mulf %45, %53 : vector<1x32xf32>
    %62 = arith.addf %60, %61 : vector<1x32xf32>
    %63 = math.tanh %62 : vector<1x32xf32>
    %64 = arith.mulf %59, %63 : vector<1x32xf32>
    %65 = vector.extract_strided_slice %5 {offsets = [2, 0], sizes = [1, 128], strides = [1, 1]} : vector<8x128xf32> to vector<1x128xf32>
    %cst_19 = arith.constant dense<0.000000e+00> : vector<1x128xf32>
    %66 = tpu.matmul %64, %6, %cst_19 {dimension_numbers = #tpu.dot_dimension_numbers<[1], [0], [0], [1], [0, 0, 1, 1], [], []>} : vector<1x32xf32>, vector<32x128xf32>, vector<1x128xf32> -> vector<1x128xf32>
    %67 = arith.addf %65, %66 : vector<1x128xf32>
    %68 = vector.extract_strided_slice %67 {offsets = [0, 0], sizes = [1, 32], strides = [1, 1]} : vector<1x128xf32> to vector<1x32xf32>
    %69 = arith.negf %68 : vector<1x32xf32>
    %70 = math.exp %69 : vector<1x32xf32>
    %cst_20 = arith.constant 1.000000e+00 : f32
    %71 = vector.broadcast %cst_20 : f32 to vector<1x32xf32>
    %72 = arith.addf %71, %70 : vector<1x32xf32>
    %73 = arith.divf %71, %72 : vector<1x32xf32>
    %74 = vector.extract_strided_slice %67 {offsets = [0, 32], sizes = [1, 32], strides = [1, 1]} : vector<1x128xf32> to vector<1x32xf32>
    %75 = arith.negf %74 : vector<1x32xf32>
    %76 = math.exp %75 : vector<1x32xf32>
    %cst_21 = arith.constant 1.000000e+00 : f32
    %77 = vector.broadcast %cst_21 : f32 to vector<1x32xf32>
    %78 = arith.addf %77, %76 : vector<1x32xf32>
    %79 = arith.divf %77, %78 : vector<1x32xf32>
    %80 = vector.extract_strided_slice %67 {offsets = [0, 64], sizes = [1, 32], strides = [1, 1]} : vector<1x128xf32> to vector<1x32xf32>
    %81 = math.tanh %80 : vector<1x32xf32>
    %82 = vector.extract_strided_slice %67 {offsets = [0, 96], sizes = [1, 32], strides = [1, 1]} : vector<1x128xf32> to vector<1x32xf32>
    %83 = arith.negf %82 : vector<1x32xf32>
    %84 = math.exp %83 : vector<1x32xf32>
    %cst_22 = arith.constant 1.000000e+00 : f32
    %85 = vector.broadcast %cst_22 : f32 to vector<1x32xf32>
    %86 = arith.addf %85, %84 : vector<1x32xf32>
    %87 = arith.divf %85, %86 : vector<1x32xf32>
    %88 = arith.mulf %79, %62 : vector<1x32xf32>
    %89 = arith.mulf %73, %81 : vector<1x32xf32>
    %90 = arith.addf %88, %89 : vector<1x32xf32>
    %91 = math.tanh %90 : vector<1x32xf32>
    %92 = arith.mulf %87, %91 : vector<1x32xf32>
    %93 = vector.extract_strided_slice %5 {offsets = [3, 0], sizes = [1, 128], strides = [1, 1]} : vector<8x128xf32> to vector<1x128xf32>
    %cst_23 = arith.constant dense<0.000000e+00> : vector<1x128xf32>
    %94 = tpu.matmul %92, %6, %cst_23 {dimension_numbers = #tpu.dot_dimension_numbers<[1], [0], [0], [1], [0, 0, 1, 1], [], []>} : vector<1x32xf32>, vector<32x128xf32>, vector<1x128xf32> -> vector<1x128xf32>
    %95 = arith.addf %93, %94 : vector<1x128xf32>
    %96 = vector.extract_strided_slice %95 {offsets = [0, 0], sizes = [1, 32], strides = [1, 1]} : vector<1x128xf32> to vector<1x32xf32>
    %97 = arith.negf %96 : vector<1x32xf32>
    %98 = math.exp %97 : vector<1x32xf32>
    %cst_24 = arith.constant 1.000000e+00 : f32
    %99 = vector.broadcast %cst_24 : f32 to vector<1x32xf32>
    %100 = arith.addf %99, %98 : vector<1x32xf32>
    %101 = arith.divf %99, %100 : vector<1x32xf32>
    %102 = vector.extract_strided_slice %95 {offsets = [0, 32], sizes = [1, 32], strides = [1, 1]} : vector<1x128xf32> to vector<1x32xf32>
    %103 = arith.negf %102 : vector<1x32xf32>
    %104 = math.exp %103 : vector<1x32xf32>
    %cst_25 = arith.constant 1.000000e+00 : f32
    %105 = vector.broadcast %cst_25 : f32 to vector<1x32xf32>
    %106 = arith.addf %105, %104 : vector<1x32xf32>
    %107 = arith.divf %105, %106 : vector<1x32xf32>
    %108 = vector.extract_strided_slice %95 {offsets = [0, 64], sizes = [1, 32], strides = [1, 1]} : vector<1x128xf32> to vector<1x32xf32>
    %109 = math.tanh %108 : vector<1x32xf32>
    %110 = vector.extract_strided_slice %95 {offsets = [0, 96], sizes = [1, 32], strides = [1, 1]} : vector<1x128xf32> to vector<1x32xf32>
    %111 = arith.negf %110 : vector<1x32xf32>
    %112 = math.exp %111 : vector<1x32xf32>
    %cst_26 = arith.constant 1.000000e+00 : f32
    %113 = vector.broadcast %cst_26 : f32 to vector<1x32xf32>
    %114 = arith.addf %113, %112 : vector<1x32xf32>
    %115 = arith.divf %113, %114 : vector<1x32xf32>
    %116 = arith.mulf %107, %90 : vector<1x32xf32>
    %117 = arith.mulf %101, %109 : vector<1x32xf32>
    %118 = arith.addf %116, %117 : vector<1x32xf32>
    %119 = math.tanh %118 : vector<1x32xf32>
    %120 = arith.mulf %115, %119 : vector<1x32xf32>
    %121 = vector.extract_strided_slice %5 {offsets = [4, 0], sizes = [1, 128], strides = [1, 1]} : vector<8x128xf32> to vector<1x128xf32>
    %cst_27 = arith.constant dense<0.000000e+00> : vector<1x128xf32>
    %122 = tpu.matmul %120, %6, %cst_27 {dimension_numbers = #tpu.dot_dimension_numbers<[1], [0], [0], [1], [0, 0, 1, 1], [], []>} : vector<1x32xf32>, vector<32x128xf32>, vector<1x128xf32> -> vector<1x128xf32>
    %123 = arith.addf %121, %122 : vector<1x128xf32>
    %124 = vector.extract_strided_slice %123 {offsets = [0, 0], sizes = [1, 32], strides = [1, 1]} : vector<1x128xf32> to vector<1x32xf32>
    %125 = arith.negf %124 : vector<1x32xf32>
    %126 = math.exp %125 : vector<1x32xf32>
    %cst_28 = arith.constant 1.000000e+00 : f32
    %127 = vector.broadcast %cst_28 : f32 to vector<1x32xf32>
    %128 = arith.addf %127, %126 : vector<1x32xf32>
    %129 = arith.divf %127, %128 : vector<1x32xf32>
    %130 = vector.extract_strided_slice %123 {offsets = [0, 32], sizes = [1, 32], strides = [1, 1]} : vector<1x128xf32> to vector<1x32xf32>
    %131 = arith.negf %130 : vector<1x32xf32>
    %132 = math.exp %131 : vector<1x32xf32>
    %cst_29 = arith.constant 1.000000e+00 : f32
    %133 = vector.broadcast %cst_29 : f32 to vector<1x32xf32>
    %134 = arith.addf %133, %132 : vector<1x32xf32>
    %135 = arith.divf %133, %134 : vector<1x32xf32>
    %136 = vector.extract_strided_slice %123 {offsets = [0, 64], sizes = [1, 32], strides = [1, 1]} : vector<1x128xf32> to vector<1x32xf32>
    %137 = math.tanh %136 : vector<1x32xf32>
    %138 = vector.extract_strided_slice %123 {offsets = [0, 96], sizes = [1, 32], strides = [1, 1]} : vector<1x128xf32> to vector<1x32xf32>
    %139 = arith.negf %138 : vector<1x32xf32>
    %140 = math.exp %139 : vector<1x32xf32>
    %cst_30 = arith.constant 1.000000e+00 : f32
    %141 = vector.broadcast %cst_30 : f32 to vector<1x32xf32>
    %142 = arith.addf %141, %140 : vector<1x32xf32>
    %143 = arith.divf %141, %142 : vector<1x32xf32>
    %144 = arith.mulf %135, %118 : vector<1x32xf32>
    %145 = arith.mulf %129, %137 : vector<1x32xf32>
    %146 = arith.addf %144, %145 : vector<1x32xf32>
    %147 = math.tanh %146 : vector<1x32xf32>
    %148 = arith.mulf %143, %147 : vector<1x32xf32>
    %149 = vector.extract_strided_slice %5 {offsets = [5, 0], sizes = [1, 128], strides = [1, 1]} : vector<8x128xf32> to vector<1x128xf32>
    %cst_31 = arith.constant dense<0.000000e+00> : vector<1x128xf32>
    %150 = tpu.matmul %148, %6, %cst_31 {dimension_numbers = #tpu.dot_dimension_numbers<[1], [0], [0], [1], [0, 0, 1, 1], [], []>} : vector<1x32xf32>, vector<32x128xf32>, vector<1x128xf32> -> vector<1x128xf32>
    %151 = arith.addf %149, %150 : vector<1x128xf32>
    %152 = vector.extract_strided_slice %151 {offsets = [0, 0], sizes = [1, 32], strides = [1, 1]} : vector<1x128xf32> to vector<1x32xf32>
    %153 = arith.negf %152 : vector<1x32xf32>
    %154 = math.exp %153 : vector<1x32xf32>
    %cst_32 = arith.constant 1.000000e+00 : f32
    %155 = vector.broadcast %cst_32 : f32 to vector<1x32xf32>
    %156 = arith.addf %155, %154 : vector<1x32xf32>
    %157 = arith.divf %155, %156 : vector<1x32xf32>
    %158 = vector.extract_strided_slice %151 {offsets = [0, 32], sizes = [1, 32], strides = [1, 1]} : vector<1x128xf32> to vector<1x32xf32>
    %159 = arith.negf %158 : vector<1x32xf32>
    %160 = math.exp %159 : vector<1x32xf32>
    %cst_33 = arith.constant 1.000000e+00 : f32
    %161 = vector.broadcast %cst_33 : f32 to vector<1x32xf32>
    %162 = arith.addf %161, %160 : vector<1x32xf32>
    %163 = arith.divf %161, %162 : vector<1x32xf32>
    %164 = vector.extract_strided_slice %151 {offsets = [0, 64], sizes = [1, 32], strides = [1, 1]} : vector<1x128xf32> to vector<1x32xf32>
    %165 = math.tanh %164 : vector<1x32xf32>
    %166 = vector.extract_strided_slice %151 {offsets = [0, 96], sizes = [1, 32], strides = [1, 1]} : vector<1x128xf32> to vector<1x32xf32>
    %167 = arith.negf %166 : vector<1x32xf32>
    %168 = math.exp %167 : vector<1x32xf32>
    %cst_34 = arith.constant 1.000000e+00 : f32
    %169 = vector.broadcast %cst_34 : f32 to vector<1x32xf32>
    %170 = arith.addf %169, %168 : vector<1x32xf32>
    %171 = arith.divf %169, %170 : vector<1x32xf32>
    %172 = arith.mulf %163, %146 : vector<1x32xf32>
    %173 = arith.mulf %157, %165 : vector<1x32xf32>
    %174 = arith.addf %172, %173 : vector<1x32xf32>
    %175 = math.tanh %174 : vector<1x32xf32>
    %176 = arith.mulf %171, %175 : vector<1x32xf32>
    %177 = vector.extract_strided_slice %5 {offsets = [6, 0], sizes = [1, 128], strides = [1, 1]} : vector<8x128xf32> to vector<1x128xf32>
    %cst_35 = arith.constant dense<0.000000e+00> : vector<1x128xf32>
    %178 = tpu.matmul %176, %6, %cst_35 {dimension_numbers = #tpu.dot_dimension_numbers<[1], [0], [0], [1], [0, 0, 1, 1], [], []>} : vector<1x32xf32>, vector<32x128xf32>, vector<1x128xf32> -> vector<1x128xf32>
    %179 = arith.addf %177, %178 : vector<1x128xf32>
    %180 = vector.extract_strided_slice %179 {offsets = [0, 0], sizes = [1, 32], strides = [1, 1]} : vector<1x128xf32> to vector<1x32xf32>
    %181 = arith.negf %180 : vector<1x32xf32>
    %182 = math.exp %181 : vector<1x32xf32>
    %cst_36 = arith.constant 1.000000e+00 : f32
    %183 = vector.broadcast %cst_36 : f32 to vector<1x32xf32>
    %184 = arith.addf %183, %182 : vector<1x32xf32>
    %185 = arith.divf %183, %184 : vector<1x32xf32>
    %186 = vector.extract_strided_slice %179 {offsets = [0, 32], sizes = [1, 32], strides = [1, 1]} : vector<1x128xf32> to vector<1x32xf32>
    %187 = arith.negf %186 : vector<1x32xf32>
    %188 = math.exp %187 : vector<1x32xf32>
    %cst_37 = arith.constant 1.000000e+00 : f32
    %189 = vector.broadcast %cst_37 : f32 to vector<1x32xf32>
    %190 = arith.addf %189, %188 : vector<1x32xf32>
    %191 = arith.divf %189, %190 : vector<1x32xf32>
    %192 = vector.extract_strided_slice %179 {offsets = [0, 64], sizes = [1, 32], strides = [1, 1]} : vector<1x128xf32> to vector<1x32xf32>
    %193 = math.tanh %192 : vector<1x32xf32>
    %194 = vector.extract_strided_slice %179 {offsets = [0, 96], sizes = [1, 32], strides = [1, 1]} : vector<1x128xf32> to vector<1x32xf32>
    %195 = arith.negf %194 : vector<1x32xf32>
    %196 = math.exp %195 : vector<1x32xf32>
    %cst_38 = arith.constant 1.000000e+00 : f32
    %197 = vector.broadcast %cst_38 : f32 to vector<1x32xf32>
    %198 = arith.addf %197, %196 : vector<1x32xf32>
    %199 = arith.divf %197, %198 : vector<1x32xf32>
    %200 = arith.mulf %191, %174 : vector<1x32xf32>
    %201 = arith.mulf %185, %193 : vector<1x32xf32>
    %202 = arith.addf %200, %201 : vector<1x32xf32>
    %203 = math.tanh %202 : vector<1x32xf32>
    %204 = arith.mulf %199, %203 : vector<1x32xf32>
    %205 = vector.extract_strided_slice %5 {offsets = [7, 0], sizes = [1, 128], strides = [1, 1]} : vector<8x128xf32> to vector<1x128xf32>
    %cst_39 = arith.constant dense<0.000000e+00> : vector<1x128xf32>
    %206 = tpu.matmul %204, %6, %cst_39 {dimension_numbers = #tpu.dot_dimension_numbers<[1], [0], [0], [1], [0, 0, 1, 1], [], []>} : vector<1x32xf32>, vector<32x128xf32>, vector<1x128xf32> -> vector<1x128xf32>
    %207 = arith.addf %205, %206 : vector<1x128xf32>
    %208 = vector.extract_strided_slice %207 {offsets = [0, 0], sizes = [1, 32], strides = [1, 1]} : vector<1x128xf32> to vector<1x32xf32>
    %209 = arith.negf %208 : vector<1x32xf32>
    %210 = math.exp %209 : vector<1x32xf32>
    %cst_40 = arith.constant 1.000000e+00 : f32
    %211 = vector.broadcast %cst_40 : f32 to vector<1x32xf32>
    %212 = arith.addf %211, %210 : vector<1x32xf32>
    %213 = arith.divf %211, %212 : vector<1x32xf32>
    %214 = vector.extract_strided_slice %207 {offsets = [0, 32], sizes = [1, 32], strides = [1, 1]} : vector<1x128xf32> to vector<1x32xf32>
    %215 = arith.negf %214 : vector<1x32xf32>
    %216 = math.exp %215 : vector<1x32xf32>
    %cst_41 = arith.constant 1.000000e+00 : f32
    %217 = vector.broadcast %cst_41 : f32 to vector<1x32xf32>
    %218 = arith.addf %217, %216 : vector<1x32xf32>
    %219 = arith.divf %217, %218 : vector<1x32xf32>
    %220 = vector.extract_strided_slice %207 {offsets = [0, 64], sizes = [1, 32], strides = [1, 1]} : vector<1x128xf32> to vector<1x32xf32>
    %221 = math.tanh %220 : vector<1x32xf32>
    %222 = vector.extract_strided_slice %207 {offsets = [0, 96], sizes = [1, 32], strides = [1, 1]} : vector<1x128xf32> to vector<1x32xf32>
    %223 = arith.negf %222 : vector<1x32xf32>
    %224 = math.exp %223 : vector<1x32xf32>
    %cst_42 = arith.constant 1.000000e+00 : f32
    %225 = vector.broadcast %cst_42 : f32 to vector<1x32xf32>
    %226 = arith.addf %225, %224 : vector<1x32xf32>
    %227 = arith.divf %225, %226 : vector<1x32xf32>
    %228 = arith.mulf %219, %202 : vector<1x32xf32>
    %229 = arith.mulf %213, %221 : vector<1x32xf32>
    %230 = arith.addf %228, %229 : vector<1x32xf32>
    %231 = math.tanh %230 : vector<1x32xf32>
    %232 = arith.mulf %227, %231 : vector<1x32xf32>
    %233 = tpu.concatenate %36, %64, %92, %120, %148, %176, %204, %232 in 0 : vector<1x32xf32>, vector<1x32xf32>, vector<1x32xf32>, vector<1x32xf32>, vector<1x32xf32>, vector<1x32xf32>, vector<1x32xf32>, vector<1x32xf32> -> vector<8x32xf32>
    %234 = tpu.concatenate %232, %204, %176, %148, %120, %92, %64, %36 in 0 : vector<1x32xf32>, vector<1x32xf32>, vector<1x32xf32>, vector<1x32xf32>, vector<1x32xf32>, vector<1x32xf32>, vector<1x32xf32>, vector<1x32xf32> -> vector<8x32xf32>
    %c0_43 = arith.constant 0 : index
    %c0_44 = arith.constant 0 : index
    %235 = vector.load %arg6[%c0_43, %c0_44] : memref<32x128xf32, #tpu.memory_space<vmem>>, vector<32x128xf32>
    %cst_45 = arith.constant dense<0.000000e+00> : vector<8x128xf32>
    %236 = tpu.matmul %233, %235, %cst_45 {dimension_numbers = #tpu.dot_dimension_numbers<[1], [0], [0], [1], [0, 0, 1, 1], [], []>} : vector<8x32xf32>, vector<32x128xf32>, vector<8x128xf32> -> vector<8x128xf32>
    %c0_46 = arith.constant 0 : index
    %c0_47 = arith.constant 0 : index
    %237 = vector.load %arg7[%c0_46, %c0_47] : memref<32x128xf32, #tpu.memory_space<vmem>>, vector<32x128xf32>
    %cst_48 = arith.constant dense<0.000000e+00> : vector<8x128xf32>
    %238 = tpu.matmul %234, %237, %cst_48 {dimension_numbers = #tpu.dot_dimension_numbers<[1], [0], [0], [1], [0, 0, 1, 1], [], []>} : vector<8x32xf32>, vector<32x128xf32>, vector<8x128xf32> -> vector<8x128xf32>
    %239 = arith.addf %236, %238 : vector<8x128xf32>
    %c0_49 = arith.constant 0 : index
    %c0_50 = arith.constant 0 : index
    %240 = vector.load %arg8[%c0_49, %c0_50] : memref<1x128xf32, #tpu.memory_space<vmem>>, vector<1x128xf32>
    %241 = vector.broadcast %240 : vector<1x128xf32> to vector<8x128xf32>
    %242 = arith.addf %239, %241 : vector<8x128xf32>
    %c0_51 = arith.constant 0 : index
    %c0_52 = arith.constant 0 : index
    %243 = vector.load %arg9[%c0_51, %c0_52] : memref<8x128xf32, #tpu.memory_space<vmem>>, vector<8x128xf32>
    tpu.vector_store %arg9[%c0_51, %c0_52], %242 {strides = array<i32>} : memref<8x128xf32, #tpu.memory_space<vmem>>, vector<8x128xf32>,
    return
  }
}

</mosaic_0001>

<llo_original>
// kernel: tpu_custom_call.1
$region0: #{tpu_custom_call.1}
  #allocation0 [shape = 'u32[]', space=smem, size = 0x4, offset = 0x4, fixed_abs, tag = 'smem constant byte address 0x4 - core index']
  #allocation1 [shape = 'u32[144,128]{1,0:T(1,128)}', space=vmem, size = 0x12000, scoped, tag = 'internal scratch']
  %s0 = inlined_call_operand.hbm [shape: f32[8,64], index: 0, kind: input, shape index: {}]
  %s1 = inlined_call_operand.hbm [shape: f32[64,128], index: 1, kind: input, shape index: {}]
  %s2 = inlined_call_operand.vmem [shape: f32[1,128], index: 2, kind: input, shape index: {}]
  %s3 = inlined_call_operand.hbm [shape: f32[32,128], index: 3, kind: input, shape index: {}]
  %s4 = inlined_call_operand.vmem [shape: f32[1,32], index: 4, kind: input, shape index: {}]
  %s5 = inlined_call_operand.vmem [shape: f32[1,32], index: 5, kind: input, shape index: {}]
  %s6 = inlined_call_operand.hbm [shape: f32[32,128], index: 6, kind: input, shape index: {}]
  %s7 = inlined_call_operand.hbm [shape: f32[32,128], index: 7, kind: input, shape index: {}]
  %s8 = inlined_call_operand.vmem [shape: f32[1,128], index: 8, kind: input, shape index: {}]
  %s9 = inlined_call_operand.hbm [shape: f32[8,128], index: 9, kind: output, shape index: {}]
  %s10 = sld [smem:[#allocation0]]
  $region66: #{tpu_custom_call.1} parent=0
    _
  %s12 = ssub.s32 1, %s10
  %s13 = scalar_select 0, %s12, %s10
  $region1: #{tpu_custom_call.1} parent=0
    #allocation2 [shape = 'u8[4096]{0}', space=vmem, size = 0x1000, scoped, tag = 'input window, operand 0, single buffered']
    #allocation3 [shape = 's32[1]{0}', space=sflag, size = 0x4, scoped, tag = 'scoped memory for tpu_custom_call.1']
    #allocation4 [shape = 's32[1]{0}', space=sflag, size = 0x4, scoped, tag = 'scoped memory for tpu_custom_call.1']
    #allocation5 [shape = 'u8[32768]{0}', space=vmem, size = 0x8000, scoped, tag = 'input window, operand 1, single buffered']
    #allocation6 [shape = 's32[1]{0}', space=sflag, size = 0x4, scoped, tag = 'scoped memory for tpu_custom_call.1']
    #allocation7 [shape = 'u8[16384]{0}', space=vmem, size = 0x4000, scoped, tag = 'input window, operand 3, single buffered']
    #allocation8 [shape = 'u8[16384]{0}', space=vmem, size = 0x4000, scoped, tag = 'input window, operand 6, single buffered']
    #allocation9 [shape = 's32[1]{0}', space=sflag, size = 0x4, scoped, tag = 'scoped memory for tpu_custom_call.1']
    #allocation10 [shape = 'u8[16384]{0}', space=vmem, size = 0x4000, scoped, tag = 'input window, operand 7, single buffered']
    #allocation11 [shape = 'u8[4096]{0}', space=vmem, size = 0x1000, scoped, tag = 'output window, operand 0, single buffered']
    %14 = vsyncpa [#allocation3], 0
    %15 = vsyncpa [#allocation6], 0
    %16 = vsyncpa [#allocation9], 0
    %17 = vsyncpa [#allocation4], 0
    // Predicated region
    $region2: #{tpu_custom_call.1} parent=1 // pred_check
      _
    $region3: #{tpu_custom_call.1} parent=1 // pred_check_branch
      %19 = sbr.rel (0) target = $region5
    $region4: #{tpu_custom_call.1} parent=1 // pred_region
      %s21 = ssub.s32 128, 128
      %22 = vsyncadd [#allocation3], %s21
      %s24 = sshll.u32 [#allocation2], 4
      %s25 = int_to_ptr.vmem [resolvable:$true] %s24
      %27 = dma.hbm_to_vmem [thread:$0]  %s0, 128, %s25, [#allocation3]
    $region5: #{tpu_custom_call.1} parent=1 // pred_fallthru
      _
    // Predicated region
    $region6: #{tpu_custom_call.1} parent=1 // pred_check
      _
    $region7: #{tpu_custom_call.1} parent=1 // pred_check_branch
      %29 = sbr.rel (0) target = $region9
    $region8: #{tpu_custom_call.1} parent=1 // pred_region
      %s31 = ssub.s32 1024, 1024
      %32 = vsyncadd [#allocation6], %s31
      %s33 = sshll.u32 [#allocation5], 4
      %s34 = int_to_ptr.vmem [resolvable:$true] %s33
      %39 = dma.hbm_to_vmem [thread:$0]  %s1, 1024, %s34, [#allocation6], 128, 128, 8
    $region9: #{tpu_custom_call.1} parent=1 // pred_fallthru
      _
    // Predicated region
    $region10: #{tpu_custom_call.1} parent=1 // pred_check
      _
    $region11: #{tpu_custom_call.1} parent=1 // pred_check_branch
      %41 = sbr.rel (0) target = $region13
    $region12: #{tpu_custom_call.1} parent=1 // pred_region
      _
    $region13: #{tpu_custom_call.1} parent=1 // pred_fallthru
      _
    // Predicated region
    $region14: #{tpu_custom_call.1} parent=1 // pred_check
      _
    $region15: #{tpu_custom_call.1} parent=1 // pred_check_branch
      %43 = sbr.rel (0) target = $region17
    $region16: #{tpu_custom_call.1} parent=1 // pred_region
      %s45 = ssub.s32 512, 512
      %46 = vsyncadd [#allocation6], %s45
      %s47 = sshll.u32 [#allocation7], 4
      %s48 = int_to_ptr.vmem [resolvable:$true] %s47
      %53 = dma.hbm_to_vmem [thread:$0]  %s3, 512, %s48, [#allocation6], 128, 128, 8
    $region17: #{tpu_custom_call.1} parent=1 // pred_fallthru
      _
    // Predicated region
    $region18: #{tpu_custom_call.1} parent=1 // pred_check
      _
    $region19: #{tpu_custom_call.1} parent=1 // pred_check_branch
      %55 = sbr.rel (0) target = $region21
    $region20: #{tpu_custom_call.1} parent=1 // pred_region
      _
    $region21: #{tpu_custom_call.1} parent=1 // pred_fallthru
      _
    // Predicated region
    $region22: #{tpu_custom_call.1} parent=1 // pred_check
      _
    $region23: #{tpu_custom_call.1} parent=1 // pred_check_branch
      %57 = sbr.rel (0) target = $region25
    $region24: #{tpu_custom_call.1} parent=1 // pred_region
      _
    $region25: #{tpu_custom_call.1} parent=1 // pred_fallthru
      _
    // Predicated region
    $region26: #{tpu_custom_call.1} parent=1 // pred_check
      _
    $region27: #{tpu_custom_call.1} parent=1 // pred_check_branch
      %59 = sbr.rel (0) target = $region29
    $region28: #{tpu_custom_call.1} parent=1 // pred_region
      %s61 = ssub.s32 512, 512
      %62 = vsyncadd [#allocation9], %s61
      %s63 = sshll.u32 [#allocation8], 4
      %s64 = int_to_ptr.vmem [resolvable:$true] %s63
      %69 = dma.hbm_to_vmem [thread:$0]  %s6, 512, %s64, [#allocation9], 128, 128, 8
    $region29: #{tpu_custom_call.1} parent=1 // pred_fallthru
      _
    // Predicated region
    $region30: #{tpu_custom_call.1} parent=1 // pred_check
      _
    $region31: #{tpu_custom_call.1} parent=1 // pred_check_branch
      %71 = sbr.rel (0) target = $region33
    $region32: #{tpu_custom_call.1} parent=1 // pred_region
      %s73 = ssub.s32 512, 512
      %74 = vsyncadd [#allocation9], %s73
      %s75 = sshll.u32 [#allocation10], 4
      %s76 = int_to_ptr.vmem [resolvable:$true] %s75
      %81 = dma.hbm_to_vmem [thread:$0]  %s7, 512, %s76, [#allocation9], 128, 128, 8
    $region33: #{tpu_custom_call.1} parent=1 // pred_fallthru
      _
    // Predicated region
    $region34: #{tpu_custom_call.1} parent=1 // pred_check
      _
    $region35: #{tpu_custom_call.1} parent=1 // pred_check_branch
      %83 = sbr.rel (0) target = $region37
    $region36: #{tpu_custom_call.1} parent=1 // pred_region
      _
    $region37: #{tpu_custom_call.1} parent=1 // pred_fallthru
      _
    // Predicated region
    $region38: #{tpu_custom_call.1} parent=1 // pred_check
      _
    $region39: #{tpu_custom_call.1} parent=1 // pred_check_branch
      %85 = sbr.rel (0) target = $region41
    $region40: #{tpu_custom_call.1} parent=1 // pred_region
      %86 = dma.done [#allocation3], 128
    $region41: #{tpu_custom_call.1} parent=1 // pred_fallthru
      _
    // Predicated region
    $region42: #{tpu_custom_call.1} parent=1 // pred_check
      _
    $region43: #{tpu_custom_call.1} parent=1 // pred_check_branch
      %88 = sbr.rel (0) target = $region45
    $region44: #{tpu_custom_call.1} parent=1 // pred_region
      %89 = dma.done [#allocation6], 1024
    $region45: #{tpu_custom_call.1} parent=1 // pred_fallthru
      _
    // Predicated region
    $region46: #{tpu_custom_call.1} parent=1 // pred_check
      _
    $region47: #{tpu_custom_call.1} parent=1 // pred_check_branch
      %91 = sbr.rel (0) target = $region49
    $region48: #{tpu_custom_call.1} parent=1 // pred_region
      %92 = dma.done [#allocation6], 512
    $region49: #{tpu_custom_call.1} parent=1 // pred_fallthru
      _
    // Predicated region
    $region50: #{tpu_custom_call.1} parent=1 // pred_check
      _
    $region51: #{tpu_custom_call.1} parent=1 // pred_check_branch
      %94 = sbr.rel (0) target = $region53
    $region52: #{tpu_custom_call.1} parent=1 // pred_region
      %95 = dma.done [#allocation9], 512
    $region53: #{tpu_custom_call.1} parent=1 // pred_fallthru
      _
    // Predicated region
    $region54: #{tpu_custom_call.1} parent=1 // pred_check
      _
    $region55: #{tpu_custom_call.1} parent=1 // pred_check_branch
      %97 = sbr.rel (0) target = $region57
    $region56: #{tpu_custom_call.1} parent=1 // pred_region
      %98 = dma.done [#allocation9], 512
    $region57: #{tpu_custom_call.1} parent=1 // pred_fallthru
      _
    %v99 = vld [vmem:[#allocation2] sm:$0xff]
    %v100 = vld [vmem:[#allocation5] sm:$0xff]
    %v101 = vld [vmem:[#allocation5 + $0x8] sm:$0xff]
    %v102 = vld [vmem:[#allocation5 + $0x10] sm:$0xff]
    %v103 = vld [vmem:[#allocation5 + $0x18] sm:$0xff]
    %v104 = vld [vmem:[#allocation5 + $0x20] sm:$0xff]
    %v105 = vld [vmem:[#allocation5 + $0x28] sm:$0xff]
    %v106 = vld [vmem:[#allocation5 + $0x30] sm:$0xff]
    %v107 = vld [vmem:[#allocation5 + $0x38] sm:$0xff]
    %v108 = vld [vmem:[%s2] sm:$0x1]
    %v110 = vlaneseq
    %v111 = vshrl.u32 %v110, 7
    %v112 = vsub.s32 0, %v111
    %v113 = vrot.slane %v108, %v112
    %vm115 = vcmask 523264
    %v117 = vsel %vm115, %v99, 0
    %119 = vmatprep.subr.mxu0 0.0
    %120 = vmatpush1.msra.mxu0 0.0
    %121 = vmatprep.subr.mxu0 0.0
    %122 = vmatpush1.msra.mxu0 0.0
    %123 = vmatprep.subr.mxu0 0.0
    %124 = vmatpush1.msra.mxu0 0.0
    %125 = vmatprep.subr.mxu0 0.0
    %126 = vmatpush1.msra.mxu0 0.0
    %127 = vmatprep.subr.mxu0 0.0
    %128 = vmatpush1.msra.mxu0 0.0
    %129 = vmatprep.subr.mxu0 0.0
    %130 = vmatpush1.msra.mxu0 0.0
    %131 = vmatprep.subr.mxu0 0.0
    %132 = vmatpush1.msra.mxu0 0.0
    %133 = vmatprep.subr.mxu0 0.0
    %134 = vmatpush1.msra.mxu0 0.0
    %135 = vmatprep.subr.mxu0 0.0
    %136 = vmatpush1.msra.mxu0 %v107
    %137 = vmatprep.subr.mxu0 0.0
    %138 = vmatpush1.msra.mxu0 %v106
    %139 = vmatprep.subr.mxu0 0.0
    %140 = vmatpush1.msra.mxu0 %v105
    %141 = vmatprep.subr.mxu0 0.0
    %142 = vmatpush1.msra.mxu0 %v104
    %143 = vmatprep.subr.mxu0 0.0
    %144 = vmatpush1.msra.mxu0 %v103
    %145 = vmatprep.subr.mxu0 0.0
    %146 = vmatpush1.msra.mxu0 %v102
    %147 = vmatprep.subr.mxu0 0.0
    %148 = vmatpush1.msra.mxu0 %v101
    %149 = vmatprep.subr.mxu0 0.0
    %150 = vmatpush1.msra.mxu0 %v100
    %151 = vmatprep.subr.mxu0 0.0
    %152 = vmatpush2.msra.mxu0 0.0
    %153 = vmatprep.subr.mxu0 0.0
    %154 = vmatpush2.msra.mxu0 0.0
    %155 = vmatprep.subr.mxu0 0.0
    %156 = vmatpush2.msra.mxu0 0.0
    %157 = vmatprep.subr.mxu0 0.0
    %158 = vmatpush2.msra.mxu0 0.0
    %159 = vmatprep.subr.mxu0 0.0
    %160 = vmatpush2.msra.mxu0 0.0
    %161 = vmatprep.subr.mxu0 0.0
    %162 = vmatpush2.msra.mxu0 0.0
    %163 = vmatprep.subr.mxu0 0.0
    %164 = vmatpush2.msra.mxu0 0.0
    %165 = vmatprep.subr.mxu0 0.0
    %166 = vmatpush2.msra.mxu0 0.0
    %167 = vmatprep.subr.mxu0 0.0
    %168 = vmatpush2.msra.mxu0 0.0
    %169 = vmatprep.subr.mxu0 0.0
    %170 = vmatpush2.msra.mxu0 0.0
    %171 = vmatprep.subr.mxu0 0.0
    %172 = vmatpush2.msra.mxu0 0.0
    %173 = vmatprep.subr.mxu0 0.0
    %174 = vmatpush2.msra.mxu0 0.0
    %175 = vmatprep.subr.mxu0 0.0
    %176 = vmatpush2.msra.mxu0 0.0
    %177 = vmatprep.subr.mxu0 0.0
    %178 = vmatpush2.msra.mxu0 0.0
    %179 = vmatprep.subr.mxu0 0.0
    %180 = vmatpush2.msra.mxu0 0.0
    %181 = vmatprep.subr.mxu0 0.0
    %182 = vmatpush2.msra.mxu0 0.0
    %183 = vmatprep.mubr.f32.mxu0 0.0
    %184 = vmatmul.mubr.f32.gmra.mxu0 %v117
    %v185 = vpop.f32.mrf.mxu0
    %v186 = vadd.f32 %v113, %v185
    %v187 = vpop.f32.mrf.mxu0
    %188 = vdwg.mxu0
    %v189 = vld [vmem:[#allocation7] sm:$0xff]
    %v190 = vld [vmem:[#allocation7 + $0x8] sm:$0xff]
    %v191 = vld [vmem:[#allocation7 + $0x10] sm:$0xff]
    %v192 = vld [vmem:[#allocation7 + $0x18] sm:$0xff]
    %v193 = vld [vmem:[%s4] sm:$0x1]
    %v194 = vld [vmem:[%s5] sm:$0x1]
    %vm195 = vcmask 261120
    %v197 = vsel %vm195, %v193, 0
    %199 = vmatprep.subr.mxu0 0.0
    %200 = vmatpush1.msra.mxu0 0.0
    %201 = vmatprep.subr.mxu0 0.0
    %202 = vmatpush1.msra.mxu0 0.0
    %203 = vmatprep.subr.mxu0 0.0
    %204 = vmatpush1.msra.mxu0 0.0
    %205 = vmatprep.subr.mxu0 0.0
    %206 = vmatpush1.msra.mxu0 0.0
    %207 = vmatprep.subr.mxu0 0.0
    %208 = vmatpush1.msra.mxu0 0.0
    %209 = vmatprep.subr.mxu0 0.0
    %210 = vmatpush1.msra.mxu0 0.0
    %211 = vmatprep.subr.mxu0 0.0
    %212 = vmatpush1.msra.mxu0 0.0
    %213 = vmatprep.subr.mxu0 0.0
    %214 = vmatpush1.msra.mxu0 0.0
    %215 = vmatprep.subr.mxu0 0.0
    %216 = vmatpush1.msra.mxu0 0.0
    %217 = vmatprep.subr.mxu0 0.0
    %218 = vmatpush1.msra.mxu0 0.0
    %219 = vmatprep.subr.mxu0 0.0
    %220 = vmatpush1.msra.mxu0 0.0
    %221 = vmatprep.subr.mxu0 0.0
    %222 = vmatpush1.msra.mxu0 0.0
    %223 = vmatprep.subr.mxu0 0.0
    %224 = vmatpush1.msra.mxu0 %v192
    %225 = vmatprep.subr.mxu0 0.0
    %226 = vmatpush1.msra.mxu0 %v191
    %227 = vmatprep.subr.mxu0 0.0
    %228 = vmatpush1.msra.mxu0 %v190
    %229 = vmatprep.subr.mxu0 0.0
    %230 = vmatpush1.msra.mxu0 %v189
    %231 = vmatprep.subr.mxu0 0.0
    %232 = vmatpush2.msra.mxu0 0.0
    %233 = vmatprep.subr.mxu0 0.0
    %234 = vmatpush2.msra.mxu0 0.0
    %235 = vmatprep.subr.mxu0 0.0
    %236 = vmatpush2.msra.mxu0 0.0
    %237 = vmatprep.subr.mxu0 0.0
    %238 = vmatpush2.msra.mxu0 0.0
    %239 = vmatprep.subr.mxu0 0.0
    %240 = vmatpush2.msra.mxu0 0.0
    %241 = vmatprep.subr.mxu0 0.0
    %242 = vmatpush2.msra.mxu0 0.0
    %243 = vmatprep.subr.mxu0 0.0
    %244 = vmatpush2.msra.mxu0 0.0
    %245 = vmatprep.subr.mxu0 0.0
    %246 = vmatpush2.msra.mxu0 0.0
    %247 = vmatprep.subr.mxu0 0.0
    %248 = vmatpush2.msra.mxu0 0.0
    %249 = vmatprep.subr.mxu0 0.0
    %250 = vmatpush2.msra.mxu0 0.0
    %251 = vmatprep.subr.mxu0 0.0
    %252 = vmatpush2.msra.mxu0 0.0
    %253 = vmatprep.subr.mxu0 0.0
    %254 = vmatpush2.msra.mxu0 0.0
    %255 = vmatprep.subr.mxu0 0.0
    %256 = vmatpush2.msra.mxu0 0.0
    %257 = vmatprep.subr.mxu0 0.0
    %258 = vmatpush2.msra.mxu0 0.0
    %259 = vmatprep.subr.mxu0 0.0
    %260 = vmatpush2.msra.mxu0 0.0
    %261 = vmatprep.subr.mxu0 0.0
    %262 = vmatpush2.msra.mxu0 0.0
    %263 = vmatprep.mubr.f32.mxu0 0.0
    %264 = vmatmul.mubr.f32.gmra.mxu0 %v197
    %v265 = vpop.f32.mrf.mxu0
    %v266 = vadd.f32 0.0, %v265
    %v267 = vpop.f32.mrf.mxu0
    %268 = vdwg.mxu0
    %v269 = vadd.f32 %v186, %v266
    %v270 = vxor.u32 %v269, 2147483648
    %v271 = vmul.f32 %v270, 1.442695
    %v272 = vpow.pop %v271
    %v273 = vadd.f32 %v272, 1.0
    %v274 = vrcp.pop %v273
    %v275 = vmul.f32 1.0, %v274
    %v276 = vtanh.pop %v269
    %v278 = vlaneseq
    %v279 = vshrl.u32 %v278, 7
    %v280 = vsub.s32 0, %v279
    %v281 = vrot.slane %v194, %v280
    %282 = vrot.lane.b32.xlu0 %v281, 32
    %v283 = vpop.permute.xlu0 %282
    %v285 = vmul.f32 %v275, %v283
    %287 = vrot.lane.b32.xlu0 %v276, 64
    %v288 = vpop.permute.xlu0 %287
    %v290 = vmul.f32 %v275, %v288
    %292 = vrot.lane.b32.xlu0 %v290, 32
    %v293 = vpop.permute.xlu0 %292
    %v295 = vadd.f32 %v285, %v293
    %v296 = vtanh.pop %v295
    %298 = vrot.lane.b32.xlu0 %v296, 64
    %v299 = vpop.permute.xlu0 %298
    %v301 = vmul.f32 %v275, %v299
    %303 = vrot.lane.b32.xlu0 %v301, 32
    %v304 = vpop.permute.xlu0 %303
    %v305 = vsel %vm195, %v304, 0
    %307 = vmatprep.subr.mxu0 0.0
    %308 = vmatpush1.msra.mxu0 0.0
    %309 = vmatprep.subr.mxu0 0.0
    %310 = vmatpush1.msra.mxu0 0.0
    %311 = vmatprep.subr.mxu0 0.0
    %312 = vmatpush1.msra.mxu0 0.0
    %313 = vmatprep.subr.mxu0 0.0
    %314 = vmatpush1.msra.mxu0 0.0
    %315 = vmatprep.subr.mxu0 0.0
    %316 = vmatpush1.msra.mxu0 0.0
    %317 = vmatprep.subr.mxu0 0.0
    %318 = vmatpush1.msra.mxu0 0.0
    %319 = vmatprep.subr.mxu0 0.0
    %320 = vmatpush1.msra.mxu0 0.0
    %321 = vmatprep.subr.mxu0 0.0
    %322 = vmatpush1.msra.mxu0 0.0
    %323 = vmatprep.subr.mxu0 0.0
    %324 = vmatpush1.msra.mxu0 0.0
    %325 = vmatprep.subr.mxu0 0.0
    %326 = vmatpush1.msra.mxu0 0.0
    %327 = vmatprep.subr.mxu0 0.0
    %328 = vmatpush1.msra.mxu0 0.0
    %329 = vmatprep.subr.mxu0 0.0
    %330 = vmatpush1.msra.mxu0 0.0
    %331 = vmatprep.subr.mxu0 0.0
    %332 = vmatpush1.msra.mxu0 %v192
    %333 = vmatprep.subr.mxu0 0.0
    %334 = vmatpush1.msra.mxu0 %v191
    %335 = vmatprep.subr.mxu0 0.0
    %336 = vmatpush1.msra.mxu0 %v190
    %337 = vmatprep.subr.mxu0 0.0
    %338 = vmatpush1.msra.mxu0 %v189
    %339 = vmatprep.subr.mxu0 0.0
    %340 = vmatpush2.msra.mxu0 0.0
    %341 = vmatprep.subr.mxu0 0.0
    %342 = vmatpush2.msra.mxu0 0.0
    %343 = vmatprep.subr.mxu0 0.0
    %344 = vmatpush2.msra.mxu0 0.0
    %345 = vmatprep.subr.mxu0 0.0
    %346 = vmatpush2.msra.mxu0 0.0
    %347 = vmatprep.subr.mxu0 0.0
    %348 = vmatpush2.msra.mxu0 0.0
    %349 = vmatprep.subr.mxu0 0.0
    %350 = vmatpush2.msra.mxu0 0.0
    %351 = vmatprep.subr.mxu0 0.0
    %352 = vmatpush2.msra.mxu0 0.0
    %353 = vmatprep.subr.mxu0 0.0
    %354 = vmatpush2.msra.mxu0 0.0
    %355 = vmatprep.subr.mxu0 0.0
    %356 = vmatpush2.msra.mxu0 0.0
    %357 = vmatprep.subr.mxu0 0.0
    %358 = vmatpush2.msra.mxu0 0.0
    %359 = vmatprep.subr.mxu0 0.0
    %360 = vmatpush2.msra.mxu0 0.0
    %361 = vmatprep.subr.mxu0 0.0
    %362 = vmatpush2.msra.mxu0 0.0
    %363 = vmatprep.subr.mxu0 0.0
    %364 = vmatpush2.msra.mxu0 0.0
    %365 = vmatprep.subr.mxu0 0.0
    %366 = vmatpush2.msra.mxu0 0.0
    %367 = vmatprep.subr.mxu0 0.0
    %368 = vmatpush2.msra.mxu0 0.0
    %369 = vmatprep.subr.mxu0 0.0
    %370 = vmatpush2.msra.mxu0 0.0
    %371 = vmatprep.mubr.f32.mxu0 0.0
    %372 = vmatmul.mubr.f32.gmra.mxu0 %v305
    %v373 = vpop.f32.mrf.mxu0
    %v374 = vadd.f32 0.0, %v373
    %v375 = vpop.f32.mrf.mxu0
    %376 = vdwg.mxu0
    %v378 = vrot.slane %v374, 7
    %v380 = vadd.f32 %v186, %v378
    %v381 = vxor.u32 %v380, 2147483648
    %v382 = vmul.f32 %v381, 1.442695
    %v383 = vpow.pop %v382
    %v384 = vadd.f32 %v383, 1.0
    %v385 = vrcp.pop %v384
    %v386 = vmul.f32 1.0, %v385
    %v387 = vtanh.pop %v380
    %v389 = vrot.slane %v295, 7
    %v391 = vmul.f32 %v386, %v389
    %393 = vrot.lane.b32.xlu0 %v387, 64
    %v394 = vpop.permute.xlu0 %393
    %v396 = vmul.f32 %v386, %v394
    %398 = vrot.lane.b32.xlu0 %v396, 32
    %v399 = vpop.permute.xlu0 %398
    %v401 = vadd.f32 %v391, %v399
    %v402 = vtanh.pop %v401
    %404 = vrot.lane.b32.xlu0 %v402, 64
    %v405 = vpop.permute.xlu0 %404
    %v407 = vmul.f32 %v386, %v405
    %v409 = vrot.slane %v407, 1
    %410 = vrot.lane.b32.xlu0 %v409, 32
    %v411 = vpop.permute.xlu0 %410
    %v412 = vsel %vm195, %v411, 0
    %414 = vmatprep.subr.mxu0 0.0
    %415 = vmatpush1.msra.mxu0 0.0
    %416 = vmatprep.subr.mxu0 0.0
    %417 = vmatpush1.msra.mxu0 0.0
    %418 = vmatprep.subr.mxu0 0.0
    %419 = vmatpush1.msra.mxu0 0.0
    %420 = vmatprep.subr.mxu0 0.0
    %421 = vmatpush1.msra.mxu0 0.0
    %422 = vmatprep.subr.mxu0 0.0
    %423 = vmatpush1.msra.mxu0 0.0
    %424 = vmatprep.subr.mxu0 0.0
    %425 = vmatpush1.msra.mxu0 0.0
    %426 = vmatprep.subr.mxu0 0.0
    %427 = vmatpush1.msra.mxu0 0.0
    %428 = vmatprep.subr.mxu0 0.0
    %429 = vmatpush1.msra.mxu0 0.0
    %430 = vmatprep.subr.mxu0 0.0
    %431 = vmatpush1.msra.mxu0 0.0
    %432 = vmatprep.subr.mxu0 0.0
    %433 = vmatpush1.msra.mxu0 0.0
    %434 = vmatprep.subr.mxu0 0.0
    %435 = vmatpush1.msra.mxu0 0.0
    %436 = vmatprep.subr.mxu0 0.0
    %437 = vmatpush1.msra.mxu0 0.0
    %438 = vmatprep.subr.mxu0 0.0
    %439 = vmatpush1.msra.mxu0 %v192
    %440 = vmatprep.subr.mxu0 0.0
    %441 = vmatpush1.msra.mxu0 %v191
    %442 = vmatprep.subr.mxu0 0.0
    %443 = vmatpush1.msra.mxu0 %v190
    %444 = vmatprep.subr.mxu0 0.0
    %445 = vmatpush1.msra.mxu0 %v189
    %446 = vmatprep.subr.mxu0 0.0
    %447 = vmatpush2.msra.mxu0 0.0
    %448 = vmatprep.subr.mxu0 0.0
    %449 = vmatpush2.msra.mxu0 0.0
    %450 = vmatprep.subr.mxu0 0.0
    %451 = vmatpush2.msra.mxu0 0.0
    %452 = vmatprep.subr.mxu0 0.0
    %453 = vmatpush2.msra.mxu0 0.0
    %454 = vmatprep.subr.mxu0 0.0
    %455 = vmatpush2.msra.mxu0 0.0
    %456 = vmatprep.subr.mxu0 0.0
    %457 = vmatpush2.msra.mxu0 0.0
    %458 = vmatprep.subr.mxu0 0.0
    %459 = vmatpush2.msra.mxu0 0.0
    %460 = vmatprep.subr.mxu0 0.0
    %461 = vmatpush2.msra.mxu0 0.0
    %462 = vmatprep.subr.mxu0 0.0
    %463 = vmatpush2.msra.mxu0 0.0
    %464 = vmatprep.subr.mxu0 0.0
    %465 = vmatpush2.msra.mxu0 0.0
    %466 = vmatprep.subr.mxu0 0.0
    %467 = vmatpush2.msra.mxu0 0.0
    %468 = vmatprep.subr.mxu0 0.0
    %469 = vmatpush2.msra.mxu0 0.0
    %470 = vmatprep.subr.mxu0 0.0
    %471 = vmatpush2.msra.mxu0 0.0
    %472 = vmatprep.subr.mxu0 0.0
    %473 = vmatpush2.msra.mxu0 0.0
    %474 = vmatprep.subr.mxu0 0.0
    %475 = vmatpush2.msra.mxu0 0.0
    %476 = vmatprep.subr.mxu0 0.0
    %477 = vmatpush2.msra.mxu0 0.0
    %478 = vmatprep.mubr.f32.mxu0 0.0
    %479 = vmatmul.mubr.f32.gmra.mxu0 %v412
    %v480 = vpop.f32.mrf.mxu0
    %v481 = vadd.f32 0.0, %v480
    %v482 = vpop.f32.mrf.mxu0
    %483 = vdwg.mxu0
    %v485 = vrot.slane %v481, 6
    %v487 = vadd.f32 %v186, %v485
    %v488 = vxor.u32 %v487, 2147483648
    %v489 = vmul.f32 %v488, 1.442695
    %v490 = vpow.pop %v489
    %v491 = vadd.f32 %v490, 1.0
    %v492 = vrcp.pop %v491
    %v493 = vmul.f32 1.0, %v492
    %v494 = vtanh.pop %v487
    %v496 = vrot.slane %v401, 7
    %v498 = vmul.f32 %v493, %v496
    %500 = vrot.lane.b32.xlu0 %v494, 64
    %v501 = vpop.permute.xlu0 %500
    %v503 = vmul.f32 %v493, %v501
    %505 = vrot.lane.b32.xlu0 %v503, 32
    %v506 = vpop.permute.xlu0 %505
    %v508 = vadd.f32 %v498, %v506
    %v509 = vtanh.pop %v508
    %511 = vrot.lane.b32.xlu0 %v509, 64
    %v512 = vpop.permute.xlu0 %511
    %v514 = vmul.f32 %v493, %v512
    %v516 = vrot.slane %v514, 2
    %517 = vrot.lane.b32.xlu0 %v516, 32
    %v518 = vpop.permute.xlu0 %517
    %v519 = vsel %vm195, %v518, 0
    %521 = vmatprep.subr.mxu0 0.0
    %522 = vmatpush1.msra.mxu0 0.0
    %523 = vmatprep.subr.mxu0 0.0
    %524 = vmatpush1.msra.mxu0 0.0
    %525 = vmatprep.subr.mxu0 0.0
    %526 = vmatpush1.msra.mxu0 0.0
    %527 = vmatprep.subr.mxu0 0.0
    %528 = vmatpush1.msra.mxu0 0.0
    %529 = vmatprep.subr.mxu0 0.0
    %530 = vmatpush1.msra.mxu0 0.0
    %531 = vmatprep.subr.mxu0 0.0
    %532 = vmatpush1.msra.mxu0 0.0
    %533 = vmatprep.subr.mxu0 0.0
    %534 = vmatpush1.msra.mxu0 0.0
    %535 = vmatprep.subr.mxu0 0.0
    %536 = vmatpush1.msra.mxu0 0.0
    %537 = vmatprep.subr.mxu0 0.0
    %538 = vmatpush1.msra.mxu0 0.0
    %539 = vmatprep.subr.mxu0 0.0
    %540 = vmatpush1.msra.mxu0 0.0
    %541 = vmatprep.subr.mxu0 0.0
    %542 = vmatpush1.msra.mxu0 0.0
    %543 = vmatprep.subr.mxu0 0.0
    %544 = vmatpush1.msra.mxu0 0.0
    %545 = vmatprep.subr.mxu0 0.0
    %546 = vmatpush1.msra.mxu0 %v192
    %547 = vmatprep.subr.mxu0 0.0
    %548 = vmatpush1.msra.mxu0 %v191
    %549 = vmatprep.subr.mxu0 0.0
    %550 = vmatpush1.msra.mxu0 %v190
    %551 = vmatprep.subr.mxu0 0.0
    %552 = vmatpush1.msra.mxu0 %v189
    %553 = vmatprep.subr.mxu0 0.0
    %554 = vmatpush2.msra.mxu0 0.0
    %555 = vmatprep.subr.mxu0 0.0
    %556 = vmatpush2.msra.mxu0 0.0
    %557 = vmatprep.subr.mxu0 0.0
    %558 = vmatpush2.msra.mxu0 0.0
    %559 = vmatprep.subr.mxu0 0.0
    %560 = vmatpush2.msra.mxu0 0.0
    %561 = vmatprep.subr.mxu0 0.0
    %562 = vmatpush2.msra.mxu0 0.0
    %563 = vmatprep.subr.mxu0 0.0
    %564 = vmatpush2.msra.mxu0 0.0
    %565 = vmatprep.subr.mxu0 0.0
    %566 = vmatpush2.msra.mxu0 0.0
    %567 = vmatprep.subr.mxu0 0.0
    %568 = vmatpush2.msra.mxu0 0.0
    %569 = vmatprep.subr.mxu0 0.0
    %570 = vmatpush2.msra.mxu0 0.0
    %571 = vmatprep.subr.mxu0 0.0
    %572 = vmatpush2.msra.mxu0 0.0
    %573 = vmatprep.subr.mxu0 0.0
    %574 = vmatpush2.msra.mxu0 0.0
    %575 = vmatprep.subr.mxu0 0.0
    %576 = vmatpush2.msra.mxu0 0.0
    %577 = vmatprep.subr.mxu0 0.0
    %578 = vmatpush2.msra.mxu0 0.0
    %579 = vmatprep.subr.mxu0 0.0
    %580 = vmatpush2.msra.mxu0 0.0
    %581 = vmatprep.subr.mxu0 0.0
    %582 = vmatpush2.msra.mxu0 0.0
    %583 = vmatprep.subr.mxu0 0.0
    %584 = vmatpush2.msra.mxu0 0.0
    %585 = vmatprep.mubr.f32.mxu0 0.0
    %586 = vmatmul.mubr.f32.gmra.mxu0 %v519
    %v587 = vpop.f32.mrf.mxu0
    %v588 = vadd.f32 0.0, %v587
    %v589 = vpop.f32.mrf.mxu0
    %590 = vdwg.mxu0
    %v592 = vrot.slane %v588, 5
    %v594 = vadd.f32 %v186, %v592
    %v595 = vxor.u32 %v594, 2147483648
    %v596 = vmul.f32 %v595, 1.442695
    %v597 = vpow.pop %v596
    %v598 = vadd.f32 %v597, 1.0
    %v599 = vrcp.pop %v598
    %v600 = vmul.f32 1.0, %v599
    %v601 = vtanh.pop %v594
    %v603 = vrot.slane %v508, 7
    %v605 = vmul.f32 %v600, %v603
    %607 = vrot.lane.b32.xlu0 %v601, 64
    %v608 = vpop.permute.xlu0 %607
    %v610 = vmul.f32 %v600, %v608
    %612 = vrot.lane.b32.xlu0 %v610, 32
    %v613 = vpop.permute.xlu0 %612
    %v615 = vadd.f32 %v605, %v613
    %v616 = vtanh.pop %v615
    %618 = vrot.lane.b32.xlu0 %v616, 64
    %v619 = vpop.permute.xlu0 %618
    %v621 = vmul.f32 %v600, %v619
    %v623 = vrot.slane %v621, 3
    %624 = vrot.lane.b32.xlu0 %v623, 32
    %v625 = vpop.permute.xlu0 %624
    %v626 = vsel %vm195, %v625, 0
    %628 = vmatprep.subr.mxu0 0.0
    %629 = vmatpush1.msra.mxu0 0.0
    %630 = vmatprep.subr.mxu0 0.0
    %631 = vmatpush1.msra.mxu0 0.0
    %632 = vmatprep.subr.mxu0 0.0
    %633 = vmatpush1.msra.mxu0 0.0
    %634 = vmatprep.subr.mxu0 0.0
    %635 = vmatpush1.msra.mxu0 0.0
    %636 = vmatprep.subr.mxu0 0.0
    %637 = vmatpush1.msra.mxu0 0.0
    %638 = vmatprep.subr.mxu0 0.0
    %639 = vmatpush1.msra.mxu0 0.0
    %640 = vmatprep.subr.mxu0 0.0
    %641 = vmatpush1.msra.mxu0 0.0
    %642 = vmatprep.subr.mxu0 0.0
    %643 = vmatpush1.msra.mxu0 0.0
    %644 = vmatprep.subr.mxu0 0.0
    %645 = vmatpush1.msra.mxu0 0.0
    %646 = vmatprep.subr.mxu0 0.0
    %647 = vmatpush1.msra.mxu0 0.0
    %648 = vmatprep.subr.mxu0 0.0
    %649 = vmatpush1.msra.mxu0 0.0
    %650 = vmatprep.subr.mxu0 0.0
    %651 = vmatpush1.msra.mxu0 0.0
    %652 = vmatprep.subr.mxu0 0.0
    %653 = vmatpush1.msra.mxu0 %v192
    %654 = vmatprep.subr.mxu0 0.0
    %655 = vmatpush1.msra.mxu0 %v191
    %656 = vmatprep.subr.mxu0 0.0
    %657 = vmatpush1.msra.mxu0 %v190
    %658 = vmatprep.subr.mxu0 0.0
    %659 = vmatpush1.msra.mxu0 %v189
    %660 = vmatprep.subr.mxu0 0.0
    %661 = vmatpush2.msra.mxu0 0.0
    %662 = vmatprep.subr.mxu0 0.0
    %663 = vmatpush2.msra.mxu0 0.0
    %664 = vmatprep.subr.mxu0 0.0
    %665 = vmatpush2.msra.mxu0 0.0
    %666 = vmatprep.subr.mxu0 0.0
    %667 = vmatpush2.msra.mxu0 0.0
    %668 = vmatprep.subr.mxu0 0.0
    %669 = vmatpush2.msra.mxu0 0.0
    %670 = vmatprep.subr.mxu0 0.0
    %671 = vmatpush2.msra.mxu0 0.0
    %672 = vmatprep.subr.mxu0 0.0
    %673 = vmatpush2.msra.mxu0 0.0
    %674 = vmatprep.subr.mxu0 0.0
    %675 = vmatpush2.msra.mxu0 0.0
    %676 = vmatprep.subr.mxu0 0.0
    %677 = vmatpush2.msra.mxu0 0.0
    %678 = vmatprep.subr.mxu0 0.0
    %679 = vmatpush2.msra.mxu0 0.0
    %680 = vmatprep.subr.mxu0 0.0
    %681 = vmatpush2.msra.mxu0 0.0
    %682 = vmatprep.subr.mxu0 0.0
    %683 = vmatpush2.msra.mxu0 0.0
    %684 = vmatprep.subr.mxu0 0.0
    %685 = vmatpush2.msra.mxu0 0.0
    %686 = vmatprep.subr.mxu0 0.0
    %687 = vmatpush2.msra.mxu0 0.0
    %688 = vmatprep.subr.mxu0 0.0
    %689 = vmatpush2.msra.mxu0 0.0
    %690 = vmatprep.subr.mxu0 0.0
    %691 = vmatpush2.msra.mxu0 0.0
    %692 = vmatprep.mubr.f32.mxu0 0.0
    %693 = vmatmul.mubr.f32.gmra.mxu0 %v626
    %v694 = vpop.f32.mrf.mxu0
    %v695 = vadd.f32 0.0, %v694
    %v696 = vpop.f32.mrf.mxu0
    %697 = vdwg.mxu0
    %v699 = vrot.slane %v695, 4
    %v701 = vadd.f32 %v186, %v699
    %v702 = vxor.u32 %v701, 2147483648
    %v703 = vmul.f32 %v702, 1.442695
    %v704 = vpow.pop %v703
    %v705 = vadd.f32 %v704, 1.0
    %v706 = vrcp.pop %v705
    %v707 = vmul.f32 1.0, %v706
    %v708 = vtanh.pop %v701
    %v710 = vrot.slane %v615, 7
    %v712 = vmul.f32 %v707, %v710
    %714 = vrot.lane.b32.xlu0 %v708, 64
    %v715 = vpop.permute.xlu0 %714
    %v717 = vmul.f32 %v707, %v715
    %719 = vrot.lane.b32.xlu0 %v717, 32
    %v720 = vpop.permute.xlu0 %719
    %v722 = vadd.f32 %v712, %v720
    %v723 = vtanh.pop %v722
    %725 = vrot.lane.b32.xlu0 %v723, 64
    %v726 = vpop.permute.xlu0 %725
    %v728 = vmul.f32 %v707, %v726
    %v730 = vrot.slane %v728, 4
    %731 = vrot.lane.b32.xlu0 %v730, 32
    %v732 = vpop.permute.xlu0 %731
    %v733 = vsel %vm195, %v732, 0
    %735 = vmatprep.subr.mxu0 0.0
    %736 = vmatpush1.msra.mxu0 0.0
    %737 = vmatprep.subr.mxu0 0.0
    %738 = vmatpush1.msra.mxu0 0.0
    %739 = vmatprep.subr.mxu0 0.0
    %740 = vmatpush1.msra.mxu0 0.0
    %741 = vmatprep.subr.mxu0 0.0
    %742 = vmatpush1.msra.mxu0 0.0
    %743 = vmatprep.subr.mxu0 0.0
    %744 = vmatpush1.msra.mxu0 0.0
    %745 = vmatprep.subr.mxu0 0.0
    %746 = vmatpush1.msra.mxu0 0.0
    %747 = vmatprep.subr.mxu0 0.0
    %748 = vmatpush1.msra.mxu0 0.0
    %749 = vmatprep.subr.mxu0 0.0
    %750 = vmatpush1.msra.mxu0 0.0
    %751 = vmatprep.subr.mxu0 0.0
    %752 = vmatpush1.msra.mxu0 0.0
    %753 = vmatprep.subr.mxu0 0.0
    %754 = vmatpush1.msra.mxu0 0.0
    %755 = vmatprep.subr.mxu0 0.0
    %756 = vmatpush1.msra.mxu0 0.0
    %757 = vmatprep.subr.mxu0 0.0
    %758 = vmatpush1.msra.mxu0 0.0
    %759 = vmatprep.subr.mxu0 0.0
    %760 = vmatpush1.msra.mxu0 %v192
    %761 = vmatprep.subr.mxu0 0.0
    %762 = vmatpush1.msra.mxu0 %v191
    %763 = vmatprep.subr.mxu0 0.0
    %764 = vmatpush1.msra.mxu0 %v190
    %765 = vmatprep.subr.mxu0 0.0
    %766 = vmatpush1.msra.mxu0 %v189
    %767 = vmatprep.subr.mxu0 0.0
    %768 = vmatpush2.msra.mxu0 0.0
    %769 = vmatprep.subr.mxu0 0.0
    %770 = vmatpush2.msra.mxu0 0.0
    %771 = vmatprep.subr.mxu0 0.0
    %772 = vmatpush2.msra.mxu0 0.0
    %773 = vmatprep.subr.mxu0 0.0
    %774 = vmatpush2.msra.mxu0 0.0
    %775 = vmatprep.subr.mxu0 0.0
    %776 = vmatpush2.msra.mxu0 0.0
    %777 = vmatprep.subr.mxu0 0.0
    %778 = vmatpush2.msra.mxu0 0.0
    %779 = vmatprep.subr.mxu0 0.0
    %780 = vmatpush2.msra.mxu0 0.0
    %781 = vmatprep.subr.mxu0 0.0
    %782 = vmatpush2.msra.mxu0 0.0
    %783 = vmatprep.subr.mxu0 0.0
    %784 = vmatpush2.msra.mxu0 0.0
    %785 = vmatprep.subr.mxu0 0.0
    %786 = vmatpush2.msra.mxu0 0.0
    %787 = vmatprep.subr.mxu0 0.0
    %788 = vmatpush2.msra.mxu0 0.0
    %789 = vmatprep.subr.mxu0 0.0
    %790 = vmatpush2.msra.mxu0 0.0
    %791 = vmatprep.subr.mxu0 0.0
    %792 = vmatpush2.msra.mxu0 0.0
    %793 = vmatprep.subr.mxu0 0.0
    %794 = vmatpush2.msra.mxu0 0.0
    %795 = vmatprep.subr.mxu0 0.0
    %796 = vmatpush2.msra.mxu0 0.0
    %797 = vmatprep.subr.mxu0 0.0
    %798 = vmatpush2.msra.mxu0 0.0
    %799 = vmatprep.mubr.f32.mxu0 0.0
    %800 = vmatmul.mubr.f32.gmra.mxu0 %v733
    %v801 = vpop.f32.mrf.mxu0
    %v802 = vadd.f32 0.0, %v801
    %v803 = vpop.f32.mrf.mxu0
    %804 = vdwg.mxu0
    %v806 = vrot.slane %v802, 3
    %v808 = vadd.f32 %v186, %v806
    %v809 = vxor.u32 %v808, 2147483648
    %v810 = vmul.f32 %v809, 1.442695
    %v811 = vpow.pop %v810
    %v812 = vadd.f32 %v811, 1.0
    %v813 = vrcp.pop %v812
    %v814 = vmul.f32 1.0, %v813
    %v815 = vtanh.pop %v808
    %v817 = vrot.slane %v722, 7
    %v819 = vmul.f32 %v814, %v817
    %821 = vrot.lane.b32.xlu0 %v815, 64
    %v822 = vpop.permute.xlu0 %821
    %v824 = vmul.f32 %v814, %v822
    %826 = vrot.lane.b32.xlu0 %v824, 32
    %v827 = vpop.permute.xlu0 %826
    %v829 = vadd.f32 %v819, %v827
    %v830 = vtanh.pop %v829
    %832 = vrot.lane.b32.xlu0 %v830, 64
    %v833 = vpop.permute.xlu0 %832
    %v835 = vmul.f32 %v814, %v833
    %v837 = vrot.slane %v835, 5
    %838 = vrot.lane.b32.xlu0 %v837, 32
    %v839 = vpop.permute.xlu0 %838
    %v840 = vsel %vm195, %v839, 0
    %842 = vmatprep.subr.mxu0 0.0
    %843 = vmatpush1.msra.mxu0 0.0
    %844 = vmatprep.subr.mxu0 0.0
    %845 = vmatpush1.msra.mxu0 0.0
    %846 = vmatprep.subr.mxu0 0.0
    %847 = vmatpush1.msra.mxu0 0.0
    %848 = vmatprep.subr.mxu0 0.0
    %849 = vmatpush1.msra.mxu0 0.0
    %850 = vmatprep.subr.mxu0 0.0
    %851 = vmatpush1.msra.mxu0 0.0
    %852 = vmatprep.subr.mxu0 0.0
    %853 = vmatpush1.msra.mxu0 0.0
    %854 = vmatprep.subr.mxu0 0.0
    %855 = vmatpush1.msra.mxu0 0.0
    %856 = vmatprep.subr.mxu0 0.0
    %857 = vmatpush1.msra.mxu0 0.0
    %858 = vmatprep.subr.mxu0 0.0
    %859 = vmatpush1.msra.mxu0 0.0
    %860 = vmatprep.subr.mxu0 0.0
    %861 = vmatpush1.msra.mxu0 0.0
    %862 = vmatprep.subr.mxu0 0.0
    %863 = vmatpush1.msra.mxu0 0.0
    %864 = vmatprep.subr.mxu0 0.0
    %865 = vmatpush1.msra.mxu0 0.0
    %866 = vmatprep.subr.mxu0 0.0
    %867 = vmatpush1.msra.mxu0 %v192
    %868 = vmatprep.subr.mxu0 0.0
    %869 = vmatpush1.msra.mxu0 %v191
    %870 = vmatprep.subr.mxu0 0.0
    %871 = vmatpush1.msra.mxu0 %v190
    %872 = vmatprep.subr.mxu0 0.0
    %873 = vmatpush1.msra.mxu0 %v189
    %874 = vmatprep.subr.mxu0 0.0
    %875 = vmatpush2.msra.mxu0 0.0
    %876 = vmatprep.subr.mxu0 0.0
    %877 = vmatpush2.msra.mxu0 0.0
    %878 = vmatprep.subr.mxu0 0.0
    %879 = vmatpush2.msra.mxu0 0.0
    %880 = vmatprep.subr.mxu0 0.0
    %881 = vmatpush2.msra.mxu0 0.0
    %882 = vmatprep.subr.mxu0 0.0
    %883 = vmatpush2.msra.mxu0 0.0
    %884 = vmatprep.subr.mxu0 0.0
    %885 = vmatpush2.msra.mxu0 0.0
    %886 = vmatprep.subr.mxu0 0.0
    %887 = vmatpush2.msra.mxu0 0.0
    %888 = vmatprep.subr.mxu0 0.0
    %889 = vmatpush2.msra.mxu0 0.0
    %890 = vmatprep.subr.mxu0 0.0
    %891 = vmatpush2.msra.mxu0 0.0
    %892 = vmatprep.subr.mxu0 0.0
    %893 = vmatpush2.msra.mxu0 0.0
    %894 = vmatprep.subr.mxu0 0.0
    %895 = vmatpush2.msra.mxu0 0.0
    %896 = vmatprep.subr.mxu0 0.0
    %897 = vmatpush2.msra.mxu0 0.0
    %898 = vmatprep.subr.mxu0 0.0
    %899 = vmatpush2.msra.mxu0 0.0
    %900 = vmatprep.subr.mxu0 0.0
    %901 = vmatpush2.msra.mxu0 0.0
    %902 = vmatprep.subr.mxu0 0.0
    %903 = vmatpush2.msra.mxu0 0.0
    %904 = vmatprep.subr.mxu0 0.0
    %905 = vmatpush2.msra.mxu0 0.0
    %906 = vmatprep.mubr.f32.mxu0 0.0
    %907 = vmatmul.mubr.f32.gmra.mxu0 %v840
    %v908 = vpop.f32.mrf.mxu0
    %v909 = vadd.f32 0.0, %v908
    %v910 = vpop.f32.mrf.mxu0
    %911 = vdwg.mxu0
    %v913 = vrot.slane %v909, 2
    %v915 = vadd.f32 %v186, %v913
    %v916 = vxor.u32 %v915, 2147483648
    %v917 = vmul.f32 %v916, 1.442695
    %v918 = vpow.pop %v917
    %v919 = vadd.f32 %v918, 1.0
    %v920 = vrcp.pop %v919
    %v921 = vmul.f32 1.0, %v920
    %v922 = vtanh.pop %v915
    %v924 = vrot.slane %v829, 7
    %v926 = vmul.f32 %v921, %v924
    %928 = vrot.lane.b32.xlu0 %v922, 64
    %v929 = vpop.permute.xlu0 %928
    %v931 = vmul.f32 %v921, %v929
    %933 = vrot.lane.b32.xlu0 %v931, 32
    %v934 = vpop.permute.xlu0 %933
    %v936 = vadd.f32 %v926, %v934
    %v937 = vtanh.pop %v936
    %939 = vrot.lane.b32.xlu0 %v937, 64
    %v940 = vpop.permute.xlu0 %939
    %v942 = vmul.f32 %v921, %v940
    %v944 = vrot.slane %v942, 6
    %945 = vrot.lane.b32.xlu0 %v944, 32
    %v946 = vpop.permute.xlu0 %945
    %v947 = vsel %vm195, %v946, 0
    %949 = vmatprep.subr.mxu0 0.0
    %950 = vmatpush1.msra.mxu0 0.0
    %951 = vmatprep.subr.mxu0 0.0
    %952 = vmatpush1.msra.mxu0 0.0
    %953 = vmatprep.subr.mxu0 0.0
    %954 = vmatpush1.msra.mxu0 0.0
    %955 = vmatprep.subr.mxu0 0.0
    %956 = vmatpush1.msra.mxu0 0.0
    %957 = vmatprep.subr.mxu0 0.0
    %958 = vmatpush1.msra.mxu0 0.0
    %959 = vmatprep.subr.mxu0 0.0
    %960 = vmatpush1.msra.mxu0 0.0
    %961 = vmatprep.subr.mxu0 0.0
    %962 = vmatpush1.msra.mxu0 0.0
    %963 = vmatprep.subr.mxu0 0.0
    %964 = vmatpush1.msra.mxu0 0.0
    %965 = vmatprep.subr.mxu0 0.0
    %966 = vmatpush1.msra.mxu0 0.0
    %967 = vmatprep.subr.mxu0 0.0
    %968 = vmatpush1.msra.mxu0 0.0
    %969 = vmatprep.subr.mxu0 0.0
    %970 = vmatpush1.msra.mxu0 0.0
    %971 = vmatprep.subr.mxu0 0.0
    %972 = vmatpush1.msra.mxu0 0.0
    %973 = vmatprep.subr.mxu0 0.0
    %974 = vmatpush1.msra.mxu0 %v192
    %975 = vmatprep.subr.mxu0 0.0
    %976 = vmatpush1.msra.mxu0 %v191
    %977 = vmatprep.subr.mxu0 0.0
    %978 = vmatpush1.msra.mxu0 %v190
    %979 = vmatprep.subr.mxu0 0.0
    %980 = vmatpush1.msra.mxu0 %v189
    %981 = vmatprep.subr.mxu0 0.0
    %982 = vmatpush2.msra.mxu0 0.0
    %983 = vmatprep.subr.mxu0 0.0
    %984 = vmatpush2.msra.mxu0 0.0
    %985 = vmatprep.subr.mxu0 0.0
    %986 = vmatpush2.msra.mxu0 0.0
    %987 = vmatprep.subr.mxu0 0.0
    %988 = vmatpush2.msra.mxu0 0.0
    %989 = vmatprep.subr.mxu0 0.0
    %990 = vmatpush2.msra.mxu0 0.0
    %991 = vmatprep.subr.mxu0 0.0
    %992 = vmatpush2.msra.mxu0 0.0
    %993 = vmatprep.subr.mxu0 0.0
    %994 = vmatpush2.msra.mxu0 0.0
    %995 = vmatprep.subr.mxu0 0.0
    %996 = vmatpush2.msra.mxu0 0.0
    %997 = vmatprep.subr.mxu0 0.0
    %998 = vmatpush2.msra.mxu0 0.0
    %999 = vmatprep.subr.mxu0 0.0
    %1000 = vmatpush2.msra.mxu0 0.0
    %1001 = vmatprep.subr.mxu0 0.0
    %1002 = vmatpush2.msra.mxu0 0.0
    %1003 = vmatprep.subr.mxu0 0.0
    %1004 = vmatpush2.msra.mxu0 0.0
    %1005 = vmatprep.subr.mxu0 0.0
    %1006 = vmatpush2.msra.mxu0 0.0
    %1007 = vmatprep.subr.mxu0 0.0
    %1008 = vmatpush2.msra.mxu0 0.0
    %1009 = vmatprep.subr.mxu0 0.0
    %1010 = vmatpush2.msra.mxu0 0.0
    %1011 = vmatprep.subr.mxu0 0.0
    %1012 = vmatpush2.msra.mxu0 0.0
    %1013 = vmatprep.mubr.f32.mxu0 0.0
    %1014 = vmatmul.mubr.f32.gmra.mxu0 %v947
    %v1015 = vpop.f32.mrf.mxu0
    %v1016 = vadd.f32 0.0, %v1015
    %v1017 = vpop.f32.mrf.mxu0
    %1018 = vdwg.mxu0
    %v1020 = vrot.slane %v1016, 1
    %v1022 = vadd.f32 %v186, %v1020
    %v1023 = vxor.u32 %v1022, 2147483648
    %v1024 = vmul.f32 %v1023, 1.442695
    %v1025 = vpow.pop %v1024
    %v1026 = vadd.f32 %v1025, 1.0
    %v1027 = vrcp.pop %v1026
    %v1028 = vmul.f32 1.0, %v1027
    %v1029 = vtanh.pop %v1022
    %v1031 = vrot.slane %v936, 7
    %v1033 = vmul.f32 %v1028, %v1031
    %1035 = vrot.lane.b32.xlu0 %v1029, 64
    %v1036 = vpop.permute.xlu0 %1035
    %v1038 = vmul.f32 %v1028, %v1036
    %1040 = vrot.lane.b32.xlu0 %v1038, 32
    %v1041 = vpop.permute.xlu0 %1040
    %v1043 = vadd.f32 %v1033, %v1041
    %v1044 = vtanh.pop %v1043
    %1046 = vrot.lane.b32.xlu0 %v1044, 64
    %v1047 = vpop.permute.xlu0 %1046
    %v1049 = vmul.f32 %v1028, %v1047
    %vm1050 = vcmask 1040384
    %v1051 = vsel %vm1050, %v301, %v407
    %vm1052 = vcmask 1041408
    %v1053 = vsel %vm1052, %v1051, %v514
    %vm1054 = vcmask 1042432
    %v1055 = vsel %vm1054, %v1053, %v621
    %vm1056 = vcmask 1043456
    %v1057 = vsel %vm1056, %v1055, %v728
    %vm1058 = vcmask 1044480
    %v1059 = vsel %vm1058, %v1057, %v835
    %vm1060 = vcmask 1045504
    %v1061 = vsel %vm1060, %v1059, %v942
    %vm1062 = vcmask 1046528
    %v1063 = vsel %vm1062, %v1061, %v1049
    %v1065 = vrot.slane %v1049, 7
    %v1067 = vrot.slane %v942, 5
    %v1069 = vrot.slane %v835, 3
    %v1071 = vrot.slane %v728, 1
    %v1073 = vrot.slane %v621, 7
    %v1075 = vrot.slane %v514, 5
    %v1077 = vrot.slane %v407, 3
    %v1079 = vrot.slane %v301, 1
    %v1081 = vsel %vm1050, %v1065, %v1067
    %v1082 = vsel %vm1052, %v1081, %v1069
    %v1083 = vsel %vm1054, %v1082, %v1071
    %v1084 = vsel %vm1056, %v1083, %v1073
    %v1085 = vsel %vm1058, %v1084, %v1075
    %v1086 = vsel %vm1060, %v1085, %v1077
    %v1087 = vsel %vm1062, %v1086, %v1079
    %v1088 = vld [vmem:[#allocation8] sm:$0xff]
    %v1089 = vld [vmem:[#allocation8 + $0x8] sm:$0xff]
    %v1090 = vld [vmem:[#allocation8 + $0x10] sm:$0xff]
    %v1091 = vld [vmem:[#allocation8 + $0x18] sm:$0xff]
    %v1092 = vld [vmem:[#allocation10] sm:$0xff]
    %v1093 = vld [vmem:[#allocation10 + $0x8] sm:$0xff]
    %v1094 = vld [vmem:[#allocation10 + $0x10] sm:$0xff]
    %v1095 = vld [vmem:[#allocation10 + $0x18] sm:$0xff]
    %1097 = vrot.lane.b32.xlu0 %v1087, 32
    %v1098 = vpop.permute.xlu0 %1097
    %v1099 = vsel %vm195, %v1098, 0
    %1101 = vmatprep.subr.mxu0 0.0
    %1102 = vmatpush1.msra.mxu0 0.0
    %1103 = vmatprep.subr.mxu0 0.0
    %1104 = vmatpush1.msra.mxu0 0.0
    %1105 = vmatprep.subr.mxu0 0.0
    %1106 = vmatpush1.msra.mxu0 0.0
    %1107 = vmatprep.subr.mxu0 0.0
    %1108 = vmatpush1.msra.mxu0 0.0
    %1109 = vmatprep.subr.mxu0 0.0
    %1110 = vmatpush1.msra.mxu0 0.0
    %1111 = vmatprep.subr.mxu0 0.0
    %1112 = vmatpush1.msra.mxu0 0.0
    %1113 = vmatprep.subr.mxu0 0.0
    %1114 = vmatpush1.msra.mxu0 0.0
    %1115 = vmatprep.subr.mxu0 0.0
    %1116 = vmatpush1.msra.mxu0 0.0
    %1117 = vmatprep.subr.mxu0 0.0
    %1118 = vmatpush1.msra.mxu0 0.0
    %1119 = vmatprep.subr.mxu0 0.0
    %1120 = vmatpush1.msra.mxu0 0.0
    %1121 = vmatprep.subr.mxu0 0.0
    %1122 = vmatpush1.msra.mxu0 0.0
    %1123 = vmatprep.subr.mxu0 0.0
    %1124 = vmatpush1.msra.mxu0 0.0
    %1125 = vmatprep.subr.mxu0 0.0
    %1126 = vmatpush1.msra.mxu0 %v1095
    %1127 = vmatprep.subr.mxu0 0.0
    %1128 = vmatpush1.msra.mxu0 %v1094
    %1129 = vmatprep.subr.mxu0 0.0
    %1130 = vmatpush1.msra.mxu0 %v1093
    %1131 = vmatprep.subr.mxu0 0.0
    %1132 = vmatpush1.msra.mxu0 %v1092
    %1133 = vmatprep.subr.mxu0 0.0
    %1134 = vmatpush2.msra.mxu0 0.0
    %1135 = vmatprep.subr.mxu0 0.0
    %1136 = vmatpush2.msra.mxu0 0.0
    %1137 = vmatprep.subr.mxu0 0.0
    %1138 = vmatpush2.msra.mxu0 0.0
    %1139 = vmatprep.subr.mxu0 0.0
    %1140 = vmatpush2.msra.mxu0 0.0
    %1141 = vmatprep.subr.mxu0 0.0
    %1142 = vmatpush2.msra.mxu0 0.0
    %1143 = vmatprep.subr.mxu0 0.0
    %1144 = vmatpush2.msra.mxu0 0.0
    %1145 = vmatprep.subr.mxu0 0.0
    %1146 = vmatpush2.msra.mxu0 0.0
    %1147 = vmatprep.subr.mxu0 0.0
    %1148 = vmatpush2.msra.mxu0 0.0
    %1149 = vmatprep.subr.mxu0 0.0
    %1150 = vmatpush2.msra.mxu0 0.0
    %1151 = vmatprep.subr.mxu0 0.0
    %1152 = vmatpush2.msra.mxu0 0.0
    %1153 = vmatprep.subr.mxu0 0.0
    %1154 = vmatpush2.msra.mxu0 0.0
    %1155 = vmatprep.subr.mxu0 0.0
    %1156 = vmatpush2.msra.mxu0 0.0
    %1157 = vmatprep.subr.mxu0 0.0
    %1158 = vmatpush2.msra.mxu0 0.0
    %1159 = vmatprep.subr.mxu0 0.0
    %1160 = vmatpush2.msra.mxu0 0.0
    %1161 = vmatprep.subr.mxu0 0.0
    %1162 = vmatpush2.msra.mxu0 0.0
    %1163 = vmatprep.subr.mxu0 0.0
    %1164 = vmatpush2.msra.mxu0 0.0
    %1165 = vmatprep.mubr.f32.mxu0 0.0
    %1166 = vmatmul.mubr.f32.gmra.mxu0 %v1099
    %v1167 = vpop.f32.mrf.mxu0
    %v1168 = vadd.f32 0.0, %v1167
    %v1169 = vpop.f32.mrf.mxu0
    %1170 = vdwg.mxu0
    %1172 = vrot.lane.b32.xlu0 %v1063, 32
    %v1173 = vpop.permute.xlu0 %1172
    %v1174 = vsel %vm195, %v1173, 0
    %1176 = vmatprep.subr.mxu0 0.0
    %1177 = vmatpush1.msra.mxu0 0.0
    %1178 = vmatprep.subr.mxu0 0.0
    %1179 = vmatpush1.msra.mxu0 0.0
    %1180 = vmatprep.subr.mxu0 0.0
    %1181 = vmatpush1.msra.mxu0 0.0
    %1182 = vmatprep.subr.mxu0 0.0
    %1183 = vmatpush1.msra.mxu0 0.0
    %1184 = vmatprep.subr.mxu0 0.0
    %1185 = vmatpush1.msra.mxu0 0.0
    %1186 = vmatprep.subr.mxu0 0.0
    %1187 = vmatpush1.msra.mxu0 0.0
    %1188 = vmatprep.subr.mxu0 0.0
    %1189 = vmatpush1.msra.mxu0 0.0
    %1190 = vmatprep.subr.mxu0 0.0
    %1191 = vmatpush1.msra.mxu0 0.0
    %1192 = vmatprep.subr.mxu0 0.0
    %1193 = vmatpush1.msra.mxu0 0.0
    %1194 = vmatprep.subr.mxu0 0.0
    %1195 = vmatpush1.msra.mxu0 0.0
    %1196 = vmatprep.subr.mxu0 0.0
    %1197 = vmatpush1.msra.mxu0 0.0
    %1198 = vmatprep.subr.mxu0 0.0
    %1199 = vmatpush1.msra.mxu0 0.0
    %1200 = vmatprep.subr.mxu0 0.0
    %1201 = vmatpush1.msra.mxu0 %v1091
    %1202 = vmatprep.subr.mxu0 0.0
    %1203 = vmatpush1.msra.mxu0 %v1090
    %1204 = vmatprep.subr.mxu0 0.0
    %1205 = vmatpush1.msra.mxu0 %v1089
    %1206 = vmatprep.subr.mxu0 0.0
    %1207 = vmatpush1.msra.mxu0 %v1088
    %1208 = vmatprep.subr.mxu0 0.0
    %1209 = vmatpush2.msra.mxu0 0.0
    %1210 = vmatprep.subr.mxu0 0.0
    %1211 = vmatpush2.msra.mxu0 0.0
    %1212 = vmatprep.subr.mxu0 0.0
    %1213 = vmatpush2.msra.mxu0 0.0
    %1214 = vmatprep.subr.mxu0 0.0
    %1215 = vmatpush2.msra.mxu0 0.0
    %1216 = vmatprep.subr.mxu0 0.0
    %1217 = vmatpush2.msra.mxu0 0.0
    %1218 = vmatprep.subr.mxu0 0.0
    %1219 = vmatpush2.msra.mxu0 0.0
    %1220 = vmatprep.subr.mxu0 0.0
    %1221 = vmatpush2.msra.mxu0 0.0
    %1222 = vmatprep.subr.mxu0 0.0
    %1223 = vmatpush2.msra.mxu0 0.0
    %1224 = vmatprep.subr.mxu0 0.0
    %1225 = vmatpush2.msra.mxu0 0.0
    %1226 = vmatprep.subr.mxu0 0.0
    %1227 = vmatpush2.msra.mxu0 0.0
    %1228 = vmatprep.subr.mxu0 0.0
    %1229 = vmatpush2.msra.mxu0 0.0
    %1230 = vmatprep.subr.mxu0 0.0
    %1231 = vmatpush2.msra.mxu0 0.0
    %1232 = vmatprep.subr.mxu0 0.0
    %1233 = vmatpush2.msra.mxu0 0.0
    %1234 = vmatprep.subr.mxu0 0.0
    %1235 = vmatpush2.msra.mxu0 0.0
    %1236 = vmatprep.subr.mxu0 0.0
    %1237 = vmatpush2.msra.mxu0 0.0
    %1238 = vmatprep.subr.mxu0 0.0
    %1239 = vmatpush2.msra.mxu0 0.0
    %1240 = vmatprep.mubr.f32.mxu0 0.0
    %1241 = vmatmul.mubr.f32.gmra.mxu0 %v1174
    %v1242 = vpop.f32.mrf.mxu0
    %v1243 = vadd.f32 %v1168, %v1242
    %v1244 = vpop.f32.mrf.mxu0
    %1245 = vdwg.mxu0
    %v1246 = vld [vmem:[%s8] sm:$0x1]
    %v1248 = vlaneseq
    %v1249 = vshrl.u32 %v1248, 7
    %v1250 = vsub.s32 0, %v1249
    %v1251 = vrot.slane %v1246, %v1250
    %v1253 = vadd.f32 %v1243, %v1251
    %1254 = vst [vmem:[#allocation11] sm:$0xff] %v1253
    // Predicated region
    $region58: #{tpu_custom_call.1} parent=1 // pred_check
      _
    $region59: #{tpu_custom_call.1} parent=1 // pred_check_branch
      %1256 = sbr.rel (0) target = $region61
    $region60: #{tpu_custom_call.1} parent=1 // pred_region
      %s1258 = ssub.s32 128, 128
      %1259 = vsyncadd [#allocation4], %s1258
      %s1261 = sshll.u32 [#allocation11], 4
      %s1262 = int_to_ptr.vmem [resolvable:$true] %s1261
      %1264 = dma.vmem_to_hbm [thread:$0]  %s1262, 128, %s9, [#allocation4]
    $region61: #{tpu_custom_call.1} parent=1 // pred_fallthru
      _
    // Predicated region
    $region62: #{tpu_custom_call.1} parent=1 // pred_check
      _
    $region63: #{tpu_custom_call.1} parent=1 // pred_check_branch
      %1266 = sbr.rel (0) target = $region65
    $region64: #{tpu_custom_call.1} parent=1 // pred_region
      %1267 = dma.done [#allocation4], 128
    $region65: #{tpu_custom_call.1} parent=1 // pred_fallthru
      _
    %1268 = vsyncpa [#allocation3], 1
    %1269 = vsyncpa [#allocation6], 1
    %1270 = vsyncpa [#allocation9], 1
    %1271 = vsyncpa [#allocation4], 1

</llo_original>
